<compile_context>
chip_gen: v7x
topology: tpu7x:2x2x1
jax: 0.10.0
libtpu: 0.0.40
codegen_flags: <defaults>
</compile_context>

<pallas_src>
import functools
import math

import jax
import jax.numpy as jnp
from jax.experimental import pallas as pl
from jax.experimental.pallas import tpu as pltpu

_LANE = 128  # lane width (last-dim tiling unit)


def _round_up(x, m):
    return (x + m - 1) // m * m


def _sublane_for(dtype):
    # min second-to-last tile dim: f32 -> 8, bf16/f16 -> 16, int8/fp8 -> 32
    return {4: 8, 2: 16, 1: 32}.get(jnp.dtype(dtype).itemsize, 8)


def _vmem_capacity_bytes():
    try:
        return int(pltpu.get_tpu_info().vmem_capacity_bytes)
    except Exception:
        return 64 * 1024 * 1024  # conservative (v7x-sized) fallback


# ----------------------------------------------------------------------------
# Fused kernel: all layers computed back-to-back on one batch-row tile.
# ----------------------------------------------------------------------------
def _mlp_fused_kernel(x_ref, b_ref, *rest, num_layers, compute_dtype, dout_ps,
                      precision):
    # rest = (w0, w1, ..., w_{L-1}, o_ref)
    #   x_ref : (tm, D0p)            batch-row tile of the input
    #   b_ref : (L, Dmax_p)          all biases, zero-padded, f32
    #   w_l   : (D_l p, D_{l+1} p)   pre-transposed, zero-padded weights
    #   o_ref : (tm, D_L p)          final-layer output tile (lane-dense)
    o_ref = rest[-1]
    w_refs = rest[:num_layers]

    z = x_ref[...].astype(compute_dtype)
    for l in range(num_layers):
        # MXU matmul in compute_dtype with f32 accumulation.
        acc = jnp.dot(z, w_refs[l][...],
                      preferred_element_type=jnp.float32,
                      precision=precision)
        # f32 epilogue: bias add (+ ReLU for all but the last layer).
        acc = acc + b_ref[l:l + 1, :dout_ps[l]]
        if l != num_layers - 1:
            # Cast back to compute_dtype: identical result (the cast happened
            # before the next dot anyway) but halves live VMEM/vreg traffic.
            z = jnp.maximum(acc, 0.0).astype(compute_dtype)
        else:
            o_ref[...] = acc.astype(o_ref.dtype)


# ----------------------------------------------------------------------------
# One-time parameter prep (outside the per-forward hot path):
#   PyTorch layout (Dout, Din) -> transposed, zero-padded (Din_pad, Dout_pad),
#   and all biases packed into a single (L, Dmax_pad) f32 array.
# Zero padding is exact: padded input columns/rows contribute 0, padded output
# columns stay 0 through bias (0-padded) and ReLU, and are sliced off.
# ----------------------------------------------------------------------------
def prepare_params_for_pallas(params, compute_dtype=jnp.bfloat16):
    # TODO(synk): optional fp8 weight path for v7x (int8 for v5e/v6e) with
    # per-channel scales applied in the f32 epilogue.
    ws, dout_ps = [], []
    for w, b in params:
        dout, din = w.shape
        din_p, dout_p = _round_up(din, _LANE), _round_up(dout, _LANE)
        wt = jnp.zeros((din_p, dout_p), compute_dtype)
        wt = wt.at[:din, :dout].set(w.T.astype(compute_dtype))
        ws.append(wt)
        dout_ps.append(dout_p)
    dmax_p = max(dout_ps)
    b_all = jnp.zeros((len(params), dmax_p), jnp.float32)
    for l, (_, b) in enumerate(params):
        b_all = b_all.at[l, :b.shape[0]].set(b.astype(jnp.float32))
    return {"weights": ws, "biases": b_all, "dout_ps": tuple(dout_ps),
            "compute_dtype": compute_dtype}


# ----------------------------------------------------------------------------
# Fused forward pass.
# ----------------------------------------------------------------------------
def mlp_forward_pallas(x, prepped, out_features, *, block_rows=None,
                       out_dtype=None):
    ws = prepped["weights"]
    b_all = prepped["biases"]
    dout_ps = prepped["dout_ps"]
    compute_dtype = prepped["compute_dtype"]
    num_layers = len(ws)

    B, Din = x.shape
    d0p = ws[0].shape[0]
    dLp = dout_ps[-1]
    assert Din <= d0p and out_features <= dLp
    out_dtype = x.dtype if out_dtype is None else jnp.dtype(out_dtype)

    # ---- generation-aware VMEM budget / batch-tile sizing ------------------
    vmem_cap = _vmem_capacity_bytes()
    vmem_limit = (vmem_cap // 8) * 7            # ~56 MiB on v7x, ~112 MiB on v5e/v6e
    if block_rows is None:
        block_rows = 512 if vmem_cap >= 96 * 1024 * 1024 else 256

    sublane = max(_sublane_for(x.dtype), _sublane_for(out_dtype))

    # Balanced tiles; force >=2 tiles (when the batch allows it) so v7x's two
    # TensorCores both get work on the "parallel" batch axis.
    n_tiles = pl.cdiv(B, block_rows)
    if n_tiles < 2 and B >= 2 * sublane:
        n_tiles = 2
    tm = _round_up(pl.cdiv(B, n_tiles), sublane)

    # Shrink tm if the (single-buffered) weights + double-buffered activation
    # tiles + live intermediates would overflow the VMEM budget.
    w_bytes = sum(int(w.size) * w.dtype.itemsize for w in ws)
    b_bytes = _round_up(num_layers, 8) * b_all.shape[1] * 4
    dmax_all = max(d0p, *dout_ps)
    c_isz = jnp.dtype(compute_dtype).itemsize

    def _est_vmem(t):
        act = (2 * t * d0p * x.dtype.itemsize          # input tile, 2 buffers
               + 2 * t * dLp * out_dtype.itemsize)      # output tile, 2 buffers
        inter = t * dmax_all * (4 + c_isz)              # f32 acc + compute-dtype z
        return w_bytes + b_bytes + act + 2 * inter

    while _est_vmem(tm) > vmem_limit - 2 * 1024 * 1024 and tm > sublane:
        tm = max(sublane, _round_up(tm // 2, sublane))
    # TODO(synk): if the weight set alone exceeds the VMEM budget (huge layers
    # on v7x's 64 MiB), tile the widest layer over Dout/K with an inner
    # pltpu.emit_pipeline instead of loading the full weight block.

    grid_n = pl.cdiv(B, tm)
    b_pad = grid_n * tm

    # Skip the wrapper-side pad copy in the already-aligned common case.
    if b_pad == B and d0p == Din:
        x_p = x
    else:
        x_p = jnp.zeros((b_pad, d0p), x.dtype).at[:B, :Din].set(x)

    # ---- specs --------------------------------------------------------------
    in_specs = [
        pl.BlockSpec((tm, d0p), lambda i: (i, 0)),
        # grid-invariant operands: single-buffered (index_map is constant)
        pl.BlockSpec(b_all.shape, lambda i: (0, 0),
                     pipeline_mode=pl.Buffered(1)),
    ]
    for w in ws:
        in_specs.append(pl.BlockSpec(w.shape, lambda i: (0, 0),
                                     pipeline_mode=pl.Buffered(1)))
    out_specs = pl.BlockSpec((tm, dLp), lambda i: (i, 0))

    # Advisory cost estimate so XLA schedules around the fused call sensibly.
    flops = sum(2 * b_pad * w.shape[0] * w.shape[1] for w in ws)
    bytes_accessed = (int(x_p.size) * x_p.dtype.itemsize
                      + b_pad * dLp * out_dtype.itemsize
                      + w_bytes + int(b_all.size) * 4)

    precision = (jax.lax.Precision.HIGHEST
                 if jnp.dtype(compute_dtype) == jnp.dtype(jnp.float32)
                 else jax.lax.Precision.DEFAULT)

    kernel = functools.partial(_mlp_fused_kernel,
                               num_layers=num_layers,
                               compute_dtype=compute_dtype,
                               dout_ps=dout_ps,
                               precision=precision)

    out_p = pl.pallas_call(
        kernel,
        out_shape=jax.ShapeDtypeStruct((b_pad, dLp), out_dtype),
        grid=(grid_n,),
        in_specs=in_specs,
        out_specs=out_specs,
        compiler_params=pltpu.CompilerParams(
            dimension_semantics=("parallel",),
            vmem_limit_bytes=int(vmem_limit)),
        cost_estimate=pl.CostEstimate(flops=flops, transcendentals=0,
                                      bytes_accessed=bytes_accessed),
    )(x_p, b_all, *ws)
    return out_p[:B, :out_features]


# ----------------------------------------------------------------------------
# PyTorch-equivalent init and pure-JAX reference.
# ----------------------------------------------------------------------------
def init_mlp_params(key, hiddens):
    """PyTorch nn.Linear-style init: U(-1/sqrt(fan_in), 1/sqrt(fan_in))."""
    params = []
    for i in range(1, len(hiddens)):
        fan_in, fan_out = hiddens[i - 1], hiddens[i]
        key, kw, kb = jax.random.split(key, 3)
        bound = 1.0 / math.sqrt(fan_in)
        w = jax.random.uniform(kw, (fan_out, fan_in), jnp.float32, -bound, bound)
        b = jax.random.uniform(kb, (fan_out,), jnp.float32, -bound, bound)
        params.append((w, b))
    return params


def mlp_reference(x, params):
    n = len(params)
    z = x
    for i, (w, b) in enumerate(params):
        z = jnp.dot(z, w.T, precision=jax.lax.Precision.HIGHEST) + b
        if i != n - 1:
            z = jnp.maximum(z, 0.0)
    return z


if __name__ == "__main__":
    key = jax.random.PRNGKey(0)

    # ---- config 1: tiny MLP, single batch tile ------------------------------
    hiddens = [32, 64, 48, 16]
    batch = 8
    kx, kp, key = jax.random.split(key, 3)
    x = jax.random.normal(kx, (batch, hiddens[0]), jnp.float32)
    params = init_mlp_params(kp, hiddens)
    ref = mlp_reference(x, params)

    # f32 compute path (HIGHEST precision): close match with the reference.
    prepped_f32 = prepare_params_for_pallas(params, compute_dtype=jnp.float32)
    out_f32 = jax.block_until_ready(
        mlp_forward_pallas(x, prepped_f32, hiddens[-1]))
    assert out_f32.shape == (batch, hiddens[-1])
    assert jnp.allclose(out_f32, ref, atol=1e-5, rtol=1e-5), "f32 mismatch"

    # bf16 matmul / f32-accumulate path (default, MXU-friendly): relaxed tol.
    prepped_bf16 = prepare_params_for_pallas(params, compute_dtype=jnp.bfloat16)
    out_bf16 = jax.block_until_ready(
        mlp_forward_pallas(x, prepped_bf16, hiddens[-1]))
    assert out_bf16.shape == (batch, hiddens[-1])
    assert jnp.allclose(out_bf16, ref, atol=5e-2, rtol=5e-2), "bf16 mismatch"

    # ---- config 2: ragged batch exercising balanced multi-tile grid ---------
    hiddens2 = [96, 256, 64]
    batch2 = 300
    kx2, kp2 = jax.random.split(key)
    x2 = jax.random.normal(kx2, (batch2, hiddens2[0]), jnp.float32)
    params2 = init_mlp_params(kp2, hiddens2)
    ref2 = mlp_reference(x2, params2)
    prepped2 = prepare_params_for_pallas(params2, compute_dtype=jnp.bfloat16)
    out2 = jax.block_until_ready(
        mlp_forward_pallas(x2, prepped2, hiddens2[-1]))
    assert out2.shape == (batch2, hiddens2[-1])
    assert jnp.allclose(out2, ref2, atol=8e-2, rtol=8e-2), "bf16 mismatch (cfg2)"

    print("KERNEL_OK")
</pallas_src>

<mosaic_0001>
module attributes {stable_mosaic.version = 11 : i64} {
  func.func @_mlp_fused_kernel(%arg0: i32, %arg1: memref<8x128xf32, #tpu.memory_space<vmem>>, %arg2: memref<3x128xf32, #tpu.memory_space<vmem>>, %arg3: memref<128x128xf32, #tpu.memory_space<vmem>>, %arg4: memref<128x128xf32, #tpu.memory_space<vmem>>, %arg5: memref<128x128xf32, #tpu.memory_space<vmem>>, %arg6: memref<8x128xf32, #tpu.memory_space<vmem>>) attributes {dimension_semantics = [#tpu.dimension_semantics<parallel>], iteration_bounds = array<i64: 1>, scalar_prefetch = 0 : i64, scratch_operands = 0 : i64, tpu.core_type = #tpu.core_type<tc>, window_params = [{transform_indices = @transform_0, window_bounds = array<i64: 8, 128>}, {pipeline_mode = #tpu.pipeline_mode<synchronous>, transform_indices = @transform_1, window_bounds = array<i64: 3, 128>}, {pipeline_mode = #tpu.pipeline_mode<synchronous>, transform_indices = @transform_2, window_bounds = array<i64: 128, 128>}, {pipeline_mode = #tpu.pipeline_mode<synchronous>, transform_indices = @transform_3, window_bounds = array<i64: 128, 128>}, {pipeline_mode = #tpu.pipeline_mode<synchronous>, transform_indices = @transform_4, window_bounds = array<i64: 128, 128>}, {transform_indices = @transform_5, window_bounds = array<i64: 8, 128>}]} {
    %c0 = arith.constant 0 : index
    %c0_0 = arith.constant 0 : index
    %0 = vector.load %arg1[%c0, %c0_0] : memref<8x128xf32, #tpu.memory_space<vmem>>, vector<8x128xf32>
    %c0_1 = arith.constant 0 : index
    %c0_2 = arith.constant 0 : index
    %1 = vector.load %arg3[%c0_1, %c0_2] : memref<128x128xf32, #tpu.memory_space<vmem>>, vector<128x128xf32>
    %cst = arith.constant dense<0.000000e+00> : vector<8x128xf32>
    %2 = tpu.matmul %0, %1, %cst {dimension_numbers = #tpu.dot_dimension_numbers<[1], [0], [0], [1], [0, 0, 1, 1], [], []>, precision = #tpu.contract_precision<fp32>} : vector<8x128xf32>, vector<128x128xf32>, vector<8x128xf32> -> vector<8x128xf32>
    %c0_3 = arith.constant 0 : index
    %c0_4 = arith.constant 0 : index
    %3 = vector.load %arg2[%c0_3, %c0_4] : memref<3x128xf32, #tpu.memory_space<vmem>>, vector<1x128xf32>
    %4 = vector.broadcast %3 : vector<1x128xf32> to vector<8x128xf32>
    %5 = arith.addf %2, %4 : vector<8x128xf32>
    %cst_5 = arith.constant 0.000000e+00 : f32
    %6 = vector.broadcast %cst_5 : f32 to vector<8x128xf32>
    %7 = arith.maximumf %5, %6 : vector<8x128xf32>
    %c0_6 = arith.constant 0 : index
    %c0_7 = arith.constant 0 : index
    %8 = vector.load %arg4[%c0_6, %c0_7] : memref<128x128xf32, #tpu.memory_space<vmem>>, vector<128x128xf32>
    %cst_8 = arith.constant dense<0.000000e+00> : vector<8x128xf32>
    %9 = tpu.matmul %7, %8, %cst_8 {dimension_numbers = #tpu.dot_dimension_numbers<[1], [0], [0], [1], [0, 0, 1, 1], [], []>, precision = #tpu.contract_precision<fp32>} : vector<8x128xf32>, vector<128x128xf32>, vector<8x128xf32> -> vector<8x128xf32>
    %c1 = arith.constant 1 : index
    %c0_9 = arith.constant 0 : index
    %10 = vector.load %arg2[%c1, %c0_9] : memref<3x128xf32, #tpu.memory_space<vmem>>, vector<1x128xf32>
    %11 = vector.broadcast %10 : vector<1x128xf32> to vector<8x128xf32>
    %12 = arith.addf %9, %11 : vector<8x128xf32>
    %cst_10 = arith.constant 0.000000e+00 : f32
    %13 = vector.broadcast %cst_10 : f32 to vector<8x128xf32>
    %14 = arith.maximumf %12, %13 : vector<8x128xf32>
    %c0_11 = arith.constant 0 : index
    %c0_12 = arith.constant 0 : index
    %15 = vector.load %arg5[%c0_11, %c0_12] : memref<128x128xf32, #tpu.memory_space<vmem>>, vector<128x128xf32>
    %cst_13 = arith.constant dense<0.000000e+00> : vector<8x128xf32>
    %16 = tpu.matmul %14, %15, %cst_13 {dimension_numbers = #tpu.dot_dimension_numbers<[1], [0], [0], [1], [0, 0, 1, 1], [], []>, precision = #tpu.contract_precision<fp32>} : vector<8x128xf32>, vector<128x128xf32>, vector<8x128xf32> -> vector<8x128xf32>
    %c2 = arith.constant 2 : index
    %c0_14 = arith.constant 0 : index
    %17 = vector.load %arg2[%c2, %c0_14] : memref<3x128xf32, #tpu.memory_space<vmem>>, vector<1x128xf32>
    %18 = vector.broadcast %17 : vector<1x128xf32> to vector<8x128xf32>
    %19 = arith.addf %16, %18 : vector<8x128xf32>
    %c0_15 = arith.constant 0 : index
    %c0_16 = arith.constant 0 : index
    %20 = vector.load %arg6[%c0_15, %c0_16] : memref<8x128xf32, #tpu.memory_space<vmem>>, vector<8x128xf32>
    tpu.vector_store %arg6[%c0_15, %c0_16], %19 {strides = array<i32>} : memref<8x128xf32, #tpu.memory_space<vmem>>, vector<8x128xf32>,
    return
  }
  func.func @transform_0(%arg0: i32) -> (i32, i32) {
    %c0_i32 = arith.constant 0 : i32
    %c0_i32_0 = arith.constant 0 : i32
    return %arg0, %c0_i32 : i32, i32
  }
  func.func @transform_1(%arg0: i32) -> (i32, i32) {
    %c0_i32 = arith.constant 0 : i32
    %c0_i32_0 = arith.constant 0 : i32
    %c0_i32_1 = arith.constant 0 : i32
    return %c0_i32, %c0_i32_0 : i32, i32
  }
  func.func @transform_2(%arg0: i32) -> (i32, i32) {
    %c0_i32 = arith.constant 0 : i32
    %c0_i32_0 = arith.constant 0 : i32
    %c0_i32_1 = arith.constant 0 : i32
    return %c0_i32, %c0_i32_0 : i32, i32
  }
  func.func @transform_3(%arg0: i32) -> (i32, i32) {
    %c0_i32 = arith.constant 0 : i32
    %c0_i32_0 = arith.constant 0 : i32
    %c0_i32_1 = arith.constant 0 : i32
    return %c0_i32, %c0_i32_0 : i32, i32
  }
  func.func @transform_4(%arg0: i32) -> (i32, i32) {
    %c0_i32 = arith.constant 0 : i32
    %c0_i32_0 = arith.constant 0 : i32
    %c0_i32_1 = arith.constant 0 : i32
    return %c0_i32, %c0_i32_0 : i32, i32
  }
  func.func @transform_5(%arg0: i32) -> (i32, i32) {
    %c0_i32 = arith.constant 0 : i32
    %c0_i32_0 = arith.constant 0 : i32
    return %arg0, %c0_i32 : i32, i32
  }
}

</mosaic_0001>

<llo_original>
// kernel: tpu_custom_call.1
$region0: #{tpu_custom_call.1}
  #allocation0 [shape = 'u32[]', space=smem, size = 0x4, offset = 0x4, fixed_abs, tag = 'smem constant byte address 0x4 - core index']
  #allocation1 [shape = 'u32[144,128]{1,0:T(1,128)}', space=vmem, size = 0x12000, scoped, tag = 'internal scratch']
  %s0 = inlined_call_operand.hbm [shape: f32[8,128], index: 0, kind: input, shape index: {}]
  %s1 = inlined_call_operand.hbm [shape: f32[3,128], index: 1, kind: input, shape index: {}]
  %s2 = inlined_call_operand.hbm [shape: f32[128,128], index: 2, kind: input, shape index: {}]
  %s3 = inlined_call_operand.hbm [shape: f32[128,128], index: 3, kind: input, shape index: {}]
  %s4 = inlined_call_operand.hbm [shape: f32[128,128], index: 4, kind: input, shape index: {}]
  %s5 = inlined_call_operand.hbm [shape: f32[8,128], index: 5, kind: output, shape index: {}]
  %s6 = sld [smem:[#allocation0]]
  $region50: #{tpu_custom_call.1} parent=0
    _
  %s8 = ssub.s32 1, %s6
  %s9 = scalar_select 0, %s8, %s6
  $region1: #{tpu_custom_call.1} parent=0
    #allocation2 [shape = 'u8[4096]{0}', space=vmem, size = 0x1000, scoped, tag = 'input window, operand 0, single buffered']
    #allocation3 [shape = 's32[1]{0}', space=sflag, size = 0x4, scoped, tag = 'scoped memory for tpu_custom_call.1']
    #allocation4 [shape = 's32[1]{0}', space=sflag, size = 0x4, scoped, tag = 'scoped memory for tpu_custom_call.1']
    #allocation5 [shape = 'u8[2048]{0}', space=vmem, size = 0x800, scoped, tag = 'input window, operand 1, single buffered']
    #allocation6 [shape = 's32[1]{0}', space=sflag, size = 0x4, scoped, tag = 'scoped memory for tpu_custom_call.1']
    #allocation7 [shape = 'u8[65536]{0}', space=vmem, size = 0x10000, scoped, tag = 'input window, operand 2, single buffered']
    #allocation8 [shape = 'u8[65536]{0}', space=vmem, size = 0x10000, scoped, tag = 'input window, operand 3, single buffered']
    #allocation9 [shape = 's32[1]{0}', space=sflag, size = 0x4, scoped, tag = 'scoped memory for tpu_custom_call.1']
    #allocation10 [shape = 'u8[65536]{0}', space=vmem, size = 0x10000, scoped, tag = 'input window, operand 4, single buffered']
    #allocation11 [shape = 'u8[4096]{0}', space=vmem, size = 0x1000, scoped, tag = 'output window, operand 0, single buffered']
    %10 = vsyncpa [#allocation3], 0
    %11 = vsyncpa [#allocation6], 0
    %12 = vsyncpa [#allocation9], 0
    %13 = vsyncpa [#allocation4], 0
    // Predicated region
    $region2: #{tpu_custom_call.1} parent=1 // pred_check
      _
    $region3: #{tpu_custom_call.1} parent=1 // pred_check_branch
      %15 = sbr.rel (0) target = $region5
    $region4: #{tpu_custom_call.1} parent=1 // pred_region
      %s17 = ssub.s32 128, 128
      %18 = vsyncadd [#allocation3], %s17
      %s20 = sshll.u32 [#allocation2], 4
      %s21 = int_to_ptr.vmem [resolvable:$true] %s20
      %23 = dma.hbm_to_vmem [thread:$0]  %s0, 128, %s21, [#allocation3]
    $region5: #{tpu_custom_call.1} parent=1 // pred_fallthru
      _
    // Predicated region
    $region6: #{tpu_custom_call.1} parent=1 // pred_check
      _
    $region7: #{tpu_custom_call.1} parent=1 // pred_check_branch
      %25 = sbr.rel (0) target = $region9
    $region8: #{tpu_custom_call.1} parent=1 // pred_region
      %s27 = ssub.s32 64, 64
      %28 = vsyncadd [#allocation6], %s27
      %s30 = sshll.u32 [#allocation5], 4
      %s31 = int_to_ptr.vmem [resolvable:$true] %s30
      %33 = dma.hbm_to_vmem [thread:$0]  %s1, 64, %s31, [#allocation6]
    $region9: #{tpu_custom_call.1} parent=1 // pred_fallthru
      _
    // Predicated region
    $region10: #{tpu_custom_call.1} parent=1 // pred_check
      _
    $region11: #{tpu_custom_call.1} parent=1 // pred_check_branch
      %35 = sbr.rel (0) target = $region13
    $region12: #{tpu_custom_call.1} parent=1 // pred_region
      %s37 = ssub.s32 2048, 2048
      %38 = vsyncadd [#allocation6], %s37
      %s39 = sshll.u32 [#allocation7], 4
      %s40 = int_to_ptr.vmem [resolvable:$true] %s39
      %45 = dma.hbm_to_vmem [thread:$0]  %s2, 2048, %s40, [#allocation6], 128, 128, 8
    $region13: #{tpu_custom_call.1} parent=1 // pred_fallthru
      _
    // Predicated region
    $region14: #{tpu_custom_call.1} parent=1 // pred_check
      _
    $region15: #{tpu_custom_call.1} parent=1 // pred_check_branch
      %47 = sbr.rel (0) target = $region17
    $region16: #{tpu_custom_call.1} parent=1 // pred_region
      %s49 = ssub.s32 2048, 2048
      %50 = vsyncadd [#allocation9], %s49
      %s51 = sshll.u32 [#allocation8], 4
      %s52 = int_to_ptr.vmem [resolvable:$true] %s51
      %57 = dma.hbm_to_vmem [thread:$0]  %s3, 2048, %s52, [#allocation9], 128, 128, 8
    $region17: #{tpu_custom_call.1} parent=1 // pred_fallthru
      _
    // Predicated region
    $region18: #{tpu_custom_call.1} parent=1 // pred_check
      _
    $region19: #{tpu_custom_call.1} parent=1 // pred_check_branch
      %59 = sbr.rel (0) target = $region21
    $region20: #{tpu_custom_call.1} parent=1 // pred_region
      %s61 = ssub.s32 2048, 2048
      %62 = vsyncadd [#allocation9], %s61
      %s63 = sshll.u32 [#allocation10], 4
      %s64 = int_to_ptr.vmem [resolvable:$true] %s63
      %69 = dma.hbm_to_vmem [thread:$0]  %s4, 2048, %s64, [#allocation9], 128, 128, 8
    $region21: #{tpu_custom_call.1} parent=1 // pred_fallthru
      _
    // Predicated region
    $region22: #{tpu_custom_call.1} parent=1 // pred_check
      _
    $region23: #{tpu_custom_call.1} parent=1 // pred_check_branch
      %71 = sbr.rel (0) target = $region25
    $region24: #{tpu_custom_call.1} parent=1 // pred_region
      %72 = dma.done [#allocation3], 128
    $region25: #{tpu_custom_call.1} parent=1 // pred_fallthru
      _
    // Predicated region
    $region26: #{tpu_custom_call.1} parent=1 // pred_check
      _
    $region27: #{tpu_custom_call.1} parent=1 // pred_check_branch
      %74 = sbr.rel (0) target = $region29
    $region28: #{tpu_custom_call.1} parent=1 // pred_region
      %75 = dma.done [#allocation6], 64
    $region29: #{tpu_custom_call.1} parent=1 // pred_fallthru
      _
    // Predicated region
    $region30: #{tpu_custom_call.1} parent=1 // pred_check
      _
    $region31: #{tpu_custom_call.1} parent=1 // pred_check_branch
      %77 = sbr.rel (0) target = $region33
    $region32: #{tpu_custom_call.1} parent=1 // pred_region
      %78 = dma.done [#allocation6], 2048
    $region33: #{tpu_custom_call.1} parent=1 // pred_fallthru
      _
    // Predicated region
    $region34: #{tpu_custom_call.1} parent=1 // pred_check
      _
    $region35: #{tpu_custom_call.1} parent=1 // pred_check_branch
      %80 = sbr.rel (0) target = $region37
    $region36: #{tpu_custom_call.1} parent=1 // pred_region
      %81 = dma.done [#allocation9], 2048
    $region37: #{tpu_custom_call.1} parent=1 // pred_fallthru
      _
    // Predicated region
    $region38: #{tpu_custom_call.1} parent=1 // pred_check
      _
    $region39: #{tpu_custom_call.1} parent=1 // pred_check_branch
      %83 = sbr.rel (0) target = $region41
    $region40: #{tpu_custom_call.1} parent=1 // pred_region
      %84 = dma.done [#allocation9], 2048
    $region41: #{tpu_custom_call.1} parent=1 // pred_fallthru
      _
    %v85 = vld [vmem:[#allocation2] sm:$0xff]
    %v86 = vld [vmem:[#allocation7] sm:$0xff]
    %v87 = vld [vmem:[#allocation7 + $0x8] sm:$0xff]
    %v88 = vld [vmem:[#allocation7 + $0x10] sm:$0xff]
    %v89 = vld [vmem:[#allocation7 + $0x18] sm:$0xff]
    %v90 = vld [vmem:[#allocation7 + $0x20] sm:$0xff]
    %v91 = vld [vmem:[#allocation7 + $0x28] sm:$0xff]
    %v92 = vld [vmem:[#allocation7 + $0x30] sm:$0xff]
    %v93 = vld [vmem:[#allocation7 + $0x38] sm:$0xff]
    %v94 = vld [vmem:[#allocation7 + $0x40] sm:$0xff]
    %v95 = vld [vmem:[#allocation7 + $0x48] sm:$0xff]
    %v96 = vld [vmem:[#allocation7 + $0x50] sm:$0xff]
    %v97 = vld [vmem:[#allocation7 + $0x58] sm:$0xff]
    %v98 = vld [vmem:[#allocation7 + $0x60] sm:$0xff]
    %v99 = vld [vmem:[#allocation7 + $0x68] sm:$0xff]
    %v100 = vld [vmem:[#allocation7 + $0x70] sm:$0xff]
    %v101 = vld [vmem:[#allocation7 + $0x78] sm:$0xff]
    %v102 = vld [vmem:[#allocation5] sm:$0x1]
    %v103 = vlaneseq
    %v104 = vshrl.u32 %v103, 7
    %v105 = vsub.s32 0, %v104
    %v106 = vrot.slane %v102, %v105
    %107 = vmatprep.subr.mxu0 0.0
    %v108 = vand.u32 %v86, 4294901760
    %109 = vmatpush1.msra.mxu0 %v108
    %110 = vmatprep.subr.mxu0 0.0
    %v111 = vand.u32 %v87, 4294901760
    %112 = vmatpush1.msra.mxu0 %v111
    %113 = vmatprep.subr.mxu0 0.0
    %v114 = vand.u32 %v88, 4294901760
    %115 = vmatpush1.msra.mxu0 %v114
    %116 = vmatprep.subr.mxu0 0.0
    %v117 = vand.u32 %v89, 4294901760
    %118 = vmatpush1.msra.mxu0 %v117
    %119 = vmatprep.subr.mxu0 0.0
    %v120 = vand.u32 %v90, 4294901760
    %121 = vmatpush1.msra.mxu0 %v120
    %122 = vmatprep.subr.mxu0 0.0
    %v123 = vand.u32 %v91, 4294901760
    %124 = vmatpush1.msra.mxu0 %v123
    %125 = vmatprep.subr.mxu0 0.0
    %v126 = vand.u32 %v92, 4294901760
    %127 = vmatpush1.msra.mxu0 %v126
    %128 = vmatprep.subr.mxu0 0.0
    %v129 = vand.u32 %v93, 4294901760
    %130 = vmatpush1.msra.mxu0 %v129
    %131 = vmatprep.subr.mxu0 0.0
    %v132 = vand.u32 %v94, 4294901760
    %133 = vmatpush1.msra.mxu0 %v132
    %134 = vmatprep.subr.mxu0 0.0
    %v135 = vand.u32 %v95, 4294901760
    %136 = vmatpush1.msra.mxu0 %v135
    %137 = vmatprep.subr.mxu0 0.0
    %v138 = vand.u32 %v96, 4294901760
    %139 = vmatpush1.msra.mxu0 %v138
    %140 = vmatprep.subr.mxu0 0.0
    %v141 = vand.u32 %v97, 4294901760
    %142 = vmatpush1.msra.mxu0 %v141
    %143 = vmatprep.subr.mxu0 0.0
    %v144 = vand.u32 %v98, 4294901760
    %145 = vmatpush1.msra.mxu0 %v144
    %146 = vmatprep.subr.mxu0 0.0
    %v147 = vand.u32 %v99, 4294901760
    %148 = vmatpush1.msra.mxu0 %v147
    %149 = vmatprep.subr.mxu0 0.0
    %v150 = vand.u32 %v100, 4294901760
    %151 = vmatpush1.msra.mxu0 %v150
    %152 = vmatprep.subr.mxu0 0.0
    %v153 = vand.u32 %v101, 4294901760
    %154 = vmatpush1.msra.mxu0 %v153
    %155 = vmatprep.subr.mxu0 0.0
    %156 = vmatpush1.msra.mxu0 0.0
    %157 = vmatprep.subr.mxu0 0.0
    %158 = vmatpush1.msra.mxu0 0.0
    %159 = vmatprep.subr.mxu0 0.0
    %160 = vmatpush1.msra.mxu0 0.0
    %161 = vmatprep.subr.mxu0 0.0
    %162 = vmatpush1.msra.mxu0 0.0
    %163 = vmatprep.subr.mxu0 0.0
    %164 = vmatpush1.msra.mxu0 0.0
    %165 = vmatprep.subr.mxu0 0.0
    %166 = vmatpush1.msra.mxu0 0.0
    %167 = vmatprep.subr.mxu0 0.0
    %168 = vmatpush1.msra.mxu0 0.0
    %169 = vmatprep.subr.mxu0 0.0
    %170 = vmatpush1.msra.mxu0 0.0
    %171 = vmatprep.subr.mxu0 0.0
    %172 = vmatpush1.msra.mxu0 0.0
    %173 = vmatprep.subr.mxu0 0.0
    %174 = vmatpush1.msra.mxu0 0.0
    %175 = vmatprep.subr.mxu0 0.0
    %176 = vmatpush1.msra.mxu0 0.0
    %177 = vmatprep.subr.mxu0 0.0
    %178 = vmatpush1.msra.mxu0 0.0
    %179 = vmatprep.subr.mxu0 0.0
    %180 = vmatpush1.msra.mxu0 0.0
    %181 = vmatprep.subr.mxu0 0.0
    %182 = vmatpush1.msra.mxu0 0.0
    %183 = vmatprep.subr.mxu0 0.0
    %184 = vmatpush1.msra.mxu0 0.0
    %185 = vmatprep.subr.mxu0 0.0
    %186 = vmatpush1.msra.mxu0 0.0
    %187 = vmatprep.mubr.f32.mxu0 0.0
    %v188 = vand.u32 %v85, 4294901760
    %v189 = vsub.f32 %v85, %v188
    %v190 = vand.u32 %v189, 4294901760
    %v191 = vsub.f32 %v189, %v190
    %v192 = vand.u32 %v191, 4294901760
    %193 = vmatmul.mubr.f32.gmra.mrb[0].mxu0 %v192
    %v194 = vpop.f32.mrb[0].mxu0
    %v195 = vadd.f32 %v106, %v194
    %v196 = vpop.f32.mrb[0].mxu0
    %197 = vdwg.mxu0
    %198 = vmatprep.subr.mxu0 0.0
    %v199 = vand.u32 %v86, 4294901760
    %v200 = vsub.f32 %v86, %v199
    %v201 = vand.u32 %v200, 4294901760
    %v202 = vsub.f32 %v200, %v201
    %v203 = vand.u32 %v202, 4294901760
    %204 = vmatpush1.msra.mxu0 %v203
    %205 = vmatprep.subr.mxu0 0.0
    %v206 = vand.u32 %v87, 4294901760
    %v207 = vsub.f32 %v87, %v206
    %v208 = vand.u32 %v207, 4294901760
    %v209 = vsub.f32 %v207, %v208
    %v210 = vand.u32 %v209, 4294901760
    %211 = vmatpush1.msra.mxu0 %v210
    %212 = vmatprep.subr.mxu0 0.0
    %v213 = vand.u32 %v88, 4294901760
    %v214 = vsub.f32 %v88, %v213
    %v215 = vand.u32 %v214, 4294901760
    %v216 = vsub.f32 %v214, %v215
    %v217 = vand.u32 %v216, 4294901760
    %218 = vmatpush1.msra.mxu0 %v217
    %219 = vmatprep.subr.mxu0 0.0
    %v220 = vand.u32 %v89, 4294901760
    %v221 = vsub.f32 %v89, %v220
    %v222 = vand.u32 %v221, 4294901760
    %v223 = vsub.f32 %v221, %v222
    %v224 = vand.u32 %v223, 4294901760
    %225 = vmatpush1.msra.mxu0 %v224
    %226 = vmatprep.subr.mxu0 0.0
    %v227 = vand.u32 %v90, 4294901760
    %v228 = vsub.f32 %v90, %v227
    %v229 = vand.u32 %v228, 4294901760
    %v230 = vsub.f32 %v228, %v229
    %v231 = vand.u32 %v230, 4294901760
    %232 = vmatpush1.msra.mxu0 %v231
    %233 = vmatprep.subr.mxu0 0.0
    %v234 = vand.u32 %v91, 4294901760
    %v235 = vsub.f32 %v91, %v234
    %v236 = vand.u32 %v235, 4294901760
    %v237 = vsub.f32 %v235, %v236
    %v238 = vand.u32 %v237, 4294901760
    %239 = vmatpush1.msra.mxu0 %v238
    %240 = vmatprep.subr.mxu0 0.0
    %v241 = vand.u32 %v92, 4294901760
    %v242 = vsub.f32 %v92, %v241
    %v243 = vand.u32 %v242, 4294901760
    %v244 = vsub.f32 %v242, %v243
    %v245 = vand.u32 %v244, 4294901760
    %246 = vmatpush1.msra.mxu0 %v245
    %247 = vmatprep.subr.mxu0 0.0
    %v248 = vand.u32 %v93, 4294901760
    %v249 = vsub.f32 %v93, %v248
    %v250 = vand.u32 %v249, 4294901760
    %v251 = vsub.f32 %v249, %v250
    %v252 = vand.u32 %v251, 4294901760
    %253 = vmatpush1.msra.mxu0 %v252
    %254 = vmatprep.subr.mxu0 0.0
    %v255 = vand.u32 %v94, 4294901760
    %v256 = vsub.f32 %v94, %v255
    %v257 = vand.u32 %v256, 4294901760
    %v258 = vsub.f32 %v256, %v257
    %v259 = vand.u32 %v258, 4294901760
    %260 = vmatpush1.msra.mxu0 %v259
    %261 = vmatprep.subr.mxu0 0.0
    %v262 = vand.u32 %v95, 4294901760
    %v263 = vsub.f32 %v95, %v262
    %v264 = vand.u32 %v263, 4294901760
    %v265 = vsub.f32 %v263, %v264
    %v266 = vand.u32 %v265, 4294901760
    %267 = vmatpush1.msra.mxu0 %v266
    %268 = vmatprep.subr.mxu0 0.0
    %v269 = vand.u32 %v96, 4294901760
    %v270 = vsub.f32 %v96, %v269
    %v271 = vand.u32 %v270, 4294901760
    %v272 = vsub.f32 %v270, %v271
    %v273 = vand.u32 %v272, 4294901760
    %274 = vmatpush1.msra.mxu0 %v273
    %275 = vmatprep.subr.mxu0 0.0
    %v276 = vand.u32 %v97, 4294901760
    %v277 = vsub.f32 %v97, %v276
    %v278 = vand.u32 %v277, 4294901760
    %v279 = vsub.f32 %v277, %v278
    %v280 = vand.u32 %v279, 4294901760
    %281 = vmatpush1.msra.mxu0 %v280
    %282 = vmatprep.subr.mxu0 0.0
    %v283 = vand.u32 %v98, 4294901760
    %v284 = vsub.f32 %v98, %v283
    %v285 = vand.u32 %v284, 4294901760
    %v286 = vsub.f32 %v284, %v285
    %v287 = vand.u32 %v286, 4294901760
    %288 = vmatpush1.msra.mxu0 %v287
    %289 = vmatprep.subr.mxu0 0.0
    %v290 = vand.u32 %v99, 4294901760
    %v291 = vsub.f32 %v99, %v290
    %v292 = vand.u32 %v291, 4294901760
    %v293 = vsub.f32 %v291, %v292
    %v294 = vand.u32 %v293, 4294901760
    %295 = vmatpush1.msra.mxu0 %v294
    %296 = vmatprep.subr.mxu0 0.0
    %v297 = vand.u32 %v100, 4294901760
    %v298 = vsub.f32 %v100, %v297
    %v299 = vand.u32 %v298, 4294901760
    %v300 = vsub.f32 %v298, %v299
    %v301 = vand.u32 %v300, 4294901760
    %302 = vmatpush1.msra.mxu0 %v301
    %303 = vmatprep.subr.mxu0 0.0
    %v304 = vand.u32 %v101, 4294901760
    %v305 = vsub.f32 %v101, %v304
    %v306 = vand.u32 %v305, 4294901760
    %v307 = vsub.f32 %v305, %v306
    %v308 = vand.u32 %v307, 4294901760
    %309 = vmatpush1.msra.mxu0 %v308
    %310 = vmatprep.subr.mxu0 0.0
    %311 = vmatpush1.msra.mxu0 0.0
    %312 = vmatprep.subr.mxu0 0.0
    %313 = vmatpush1.msra.mxu0 0.0
    %314 = vmatprep.subr.mxu0 0.0
    %315 = vmatpush1.msra.mxu0 0.0
    %316 = vmatprep.subr.mxu0 0.0
    %317 = vmatpush1.msra.mxu0 0.0
    %318 = vmatprep.subr.mxu0 0.0
    %319 = vmatpush1.msra.mxu0 0.0
    %320 = vmatprep.subr.mxu0 0.0
    %321 = vmatpush1.msra.mxu0 0.0
    %322 = vmatprep.subr.mxu0 0.0
    %323 = vmatpush1.msra.mxu0 0.0
    %324 = vmatprep.subr.mxu0 0.0
    %325 = vmatpush1.msra.mxu0 0.0
    %326 = vmatprep.subr.mxu0 0.0
    %327 = vmatpush1.msra.mxu0 0.0
    %328 = vmatprep.subr.mxu0 0.0
    %329 = vmatpush1.msra.mxu0 0.0
    %330 = vmatprep.subr.mxu0 0.0
    %331 = vmatpush1.msra.mxu0 0.0
    %332 = vmatprep.subr.mxu0 0.0
    %333 = vmatpush1.msra.mxu0 0.0
    %334 = vmatprep.subr.mxu0 0.0
    %335 = vmatpush1.msra.mxu0 0.0
    %336 = vmatprep.subr.mxu0 0.0
    %337 = vmatpush1.msra.mxu0 0.0
    %338 = vmatprep.subr.mxu0 0.0
    %339 = vmatpush1.msra.mxu0 0.0
    %340 = vmatprep.subr.mxu0 0.0
    %341 = vmatpush1.msra.mxu0 0.0
    %342 = vmatprep.mubr.f32.mxu0 0.0
    %v343 = vand.u32 %v85, 4294901760
    %344 = vmatmul.mubr.f32.gmra.mrb[0].mxu0 %v343
    %v345 = vpop.f32.mrb[0].mxu0
    %v346 = vadd.f32 %v195, %v345
    %v347 = vpop.f32.mrb[0].mxu0
    %348 = vdwg.mxu0
    %349 = vmatprep.subr.mxu0 0.0
    %v350 = vand.u32 %v86, 4294901760
    %v351 = vsub.f32 %v86, %v350
    %352 = vmatpush1.msra.mxu0 %v351
    %353 = vmatprep.subr.mxu0 0.0
    %v354 = vand.u32 %v87, 4294901760
    %v355 = vsub.f32 %v87, %v354
    %356 = vmatpush1.msra.mxu0 %v355
    %357 = vmatprep.subr.mxu0 0.0
    %v358 = vand.u32 %v88, 4294901760
    %v359 = vsub.f32 %v88, %v358
    %360 = vmatpush1.msra.mxu0 %v359
    %361 = vmatprep.subr.mxu0 0.0
    %v362 = vand.u32 %v89, 4294901760
    %v363 = vsub.f32 %v89, %v362
    %364 = vmatpush1.msra.mxu0 %v363
    %365 = vmatprep.subr.mxu0 0.0
    %v366 = vand.u32 %v90, 4294901760
    %v367 = vsub.f32 %v90, %v366
    %368 = vmatpush1.msra.mxu0 %v367
    %369 = vmatprep.subr.mxu0 0.0
    %v370 = vand.u32 %v91, 4294901760
    %v371 = vsub.f32 %v91, %v370
    %372 = vmatpush1.msra.mxu0 %v371
    %373 = vmatprep.subr.mxu0 0.0
    %v374 = vand.u32 %v92, 4294901760
    %v375 = vsub.f32 %v92, %v374
    %376 = vmatpush1.msra.mxu0 %v375
    %377 = vmatprep.subr.mxu0 0.0
    %v378 = vand.u32 %v93, 4294901760
    %v379 = vsub.f32 %v93, %v378
    %380 = vmatpush1.msra.mxu0 %v379
    %381 = vmatprep.subr.mxu0 0.0
    %v382 = vand.u32 %v94, 4294901760
    %v383 = vsub.f32 %v94, %v382
    %384 = vmatpush1.msra.mxu0 %v383
    %385 = vmatprep.subr.mxu0 0.0
    %v386 = vand.u32 %v95, 4294901760
    %v387 = vsub.f32 %v95, %v386
    %388 = vmatpush1.msra.mxu0 %v387
    %389 = vmatprep.subr.mxu0 0.0
    %v390 = vand.u32 %v96, 4294901760
    %v391 = vsub.f32 %v96, %v390
    %392 = vmatpush1.msra.mxu0 %v391
    %393 = vmatprep.subr.mxu0 0.0
    %v394 = vand.u32 %v97, 4294901760
    %v395 = vsub.f32 %v97, %v394
    %396 = vmatpush1.msra.mxu0 %v395
    %397 = vmatprep.subr.mxu0 0.0
    %v398 = vand.u32 %v98, 4294901760
    %v399 = vsub.f32 %v98, %v398
    %400 = vmatpush1.msra.mxu0 %v399
    %401 = vmatprep.subr.mxu0 0.0
    %v402 = vand.u32 %v99, 4294901760
    %v403 = vsub.f32 %v99, %v402
    %404 = vmatpush1.msra.mxu0 %v403
    %405 = vmatprep.subr.mxu0 0.0
    %v406 = vand.u32 %v100, 4294901760
    %v407 = vsub.f32 %v100, %v406
    %408 = vmatpush1.msra.mxu0 %v407
    %409 = vmatprep.subr.mxu0 0.0
    %v410 = vand.u32 %v101, 4294901760
    %v411 = vsub.f32 %v101, %v410
    %412 = vmatpush1.msra.mxu0 %v411
    %413 = vmatprep.subr.mxu0 0.0
    %414 = vmatpush1.msra.mxu0 0.0
    %415 = vmatprep.subr.mxu0 0.0
    %416 = vmatpush1.msra.mxu0 0.0
    %417 = vmatprep.subr.mxu0 0.0
    %418 = vmatpush1.msra.mxu0 0.0
    %419 = vmatprep.subr.mxu0 0.0
    %420 = vmatpush1.msra.mxu0 0.0
    %421 = vmatprep.subr.mxu0 0.0
    %422 = vmatpush1.msra.mxu0 0.0
    %423 = vmatprep.subr.mxu0 0.0
    %424 = vmatpush1.msra.mxu0 0.0
    %425 = vmatprep.subr.mxu0 0.0
    %426 = vmatpush1.msra.mxu0 0.0
    %427 = vmatprep.subr.mxu0 0.0
    %428 = vmatpush1.msra.mxu0 0.0
    %429 = vmatprep.subr.mxu0 0.0
    %430 = vmatpush1.msra.mxu0 0.0
    %431 = vmatprep.subr.mxu0 0.0
    %432 = vmatpush1.msra.mxu0 0.0
    %433 = vmatprep.subr.mxu0 0.0
    %434 = vmatpush1.msra.mxu0 0.0
    %435 = vmatprep.subr.mxu0 0.0
    %436 = vmatpush1.msra.mxu0 0.0
    %437 = vmatprep.subr.mxu0 0.0
    %438 = vmatpush1.msra.mxu0 0.0
    %439 = vmatprep.subr.mxu0 0.0
    %440 = vmatpush1.msra.mxu0 0.0
    %441 = vmatprep.subr.mxu0 0.0
    %442 = vmatpush1.msra.mxu0 0.0
    %443 = vmatprep.subr.mxu0 0.0
    %444 = vmatpush1.msra.mxu0 0.0
    %445 = vmatprep.mubr.f32.mxu0 0.0
    %v446 = vand.u32 %v85, 4294901760
    %v447 = vsub.f32 %v85, %v446
    %448 = vmatmul.mubr.f32.gmra.mrb[0].mxu0 %v447
    %v449 = vpop.f32.mrb[0].mxu0
    %v450 = vadd.f32 %v346, %v449
    %v451 = vpop.f32.mrb[0].mxu0
    %452 = vdwg.mxu0
    %453 = vmatprep.subr.mxu0 0.0
    %v454 = vand.u32 %v86, 4294901760
    %455 = vmatpush1.msra.mxu0 %v454
    %456 = vmatprep.subr.mxu0 0.0
    %v457 = vand.u32 %v87, 4294901760
    %458 = vmatpush1.msra.mxu0 %v457
    %459 = vmatprep.subr.mxu0 0.0
    %v460 = vand.u32 %v88, 4294901760
    %461 = vmatpush1.msra.mxu0 %v460
    %462 = vmatprep.subr.mxu0 0.0
    %v463 = vand.u32 %v89, 4294901760
    %464 = vmatpush1.msra.mxu0 %v463
    %465 = vmatprep.subr.mxu0 0.0
    %v466 = vand.u32 %v90, 4294901760
    %467 = vmatpush1.msra.mxu0 %v466
    %468 = vmatprep.subr.mxu0 0.0
    %v469 = vand.u32 %v91, 4294901760
    %470 = vmatpush1.msra.mxu0 %v469
    %471 = vmatprep.subr.mxu0 0.0
    %v472 = vand.u32 %v92, 4294901760
    %473 = vmatpush1.msra.mxu0 %v472
    %474 = vmatprep.subr.mxu0 0.0
    %v475 = vand.u32 %v93, 4294901760
    %476 = vmatpush1.msra.mxu0 %v475
    %477 = vmatprep.subr.mxu0 0.0
    %v478 = vand.u32 %v94, 4294901760
    %479 = vmatpush1.msra.mxu0 %v478
    %480 = vmatprep.subr.mxu0 0.0
    %v481 = vand.u32 %v95, 4294901760
    %482 = vmatpush1.msra.mxu0 %v481
    %483 = vmatprep.subr.mxu0 0.0
    %v484 = vand.u32 %v96, 4294901760
    %485 = vmatpush1.msra.mxu0 %v484
    %486 = vmatprep.subr.mxu0 0.0
    %v487 = vand.u32 %v97, 4294901760
    %488 = vmatpush1.msra.mxu0 %v487
    %489 = vmatprep.subr.mxu0 0.0
    %v490 = vand.u32 %v98, 4294901760
    %491 = vmatpush1.msra.mxu0 %v490
    %492 = vmatprep.subr.mxu0 0.0
    %v493 = vand.u32 %v99, 4294901760
    %494 = vmatpush1.msra.mxu0 %v493
    %495 = vmatprep.subr.mxu0 0.0
    %v496 = vand.u32 %v100, 4294901760
    %497 = vmatpush1.msra.mxu0 %v496
    %498 = vmatprep.subr.mxu0 0.0
    %v499 = vand.u32 %v101, 4294901760
    %500 = vmatpush1.msra.mxu0 %v499
    %501 = vmatprep.subr.mxu0 0.0
    %502 = vmatpush1.msra.mxu0 0.0
    %503 = vmatprep.subr.mxu0 0.0
    %504 = vmatpush1.msra.mxu0 0.0
    %505 = vmatprep.subr.mxu0 0.0
    %506 = vmatpush1.msra.mxu0 0.0
    %507 = vmatprep.subr.mxu0 0.0
    %508 = vmatpush1.msra.mxu0 0.0
    %509 = vmatprep.subr.mxu0 0.0
    %510 = vmatpush1.msra.mxu0 0.0
    %511 = vmatprep.subr.mxu0 0.0
    %512 = vmatpush1.msra.mxu0 0.0
    %513 = vmatprep.subr.mxu0 0.0
    %514 = vmatpush1.msra.mxu0 0.0
    %515 = vmatprep.subr.mxu0 0.0
    %516 = vmatpush1.msra.mxu0 0.0
    %517 = vmatprep.subr.mxu0 0.0
    %518 = vmatpush1.msra.mxu0 0.0
    %519 = vmatprep.subr.mxu0 0.0
    %520 = vmatpush1.msra.mxu0 0.0
    %521 = vmatprep.subr.mxu0 0.0
    %522 = vmatpush1.msra.mxu0 0.0
    %523 = vmatprep.subr.mxu0 0.0
    %524 = vmatpush1.msra.mxu0 0.0
    %525 = vmatprep.subr.mxu0 0.0
    %526 = vmatpush1.msra.mxu0 0.0
    %527 = vmatprep.subr.mxu0 0.0
    %528 = vmatpush1.msra.mxu0 0.0
    %529 = vmatprep.subr.mxu0 0.0
    %530 = vmatpush1.msra.mxu0 0.0
    %531 = vmatprep.subr.mxu0 0.0
    %532 = vmatpush1.msra.mxu0 0.0
    %533 = vmatprep.mubr.f32.mxu0 0.0
    %v534 = vand.u32 %v85, 4294901760
    %v535 = vsub.f32 %v85, %v534
    %v536 = vand.u32 %v535, 4294901760
    %537 = vmatmul.mubr.f32.gmra.mrb[0].mxu0 %v536
    %v538 = vpop.f32.mrb[0].mxu0
    %v539 = vadd.f32 %v450, %v538
    %v540 = vpop.f32.mrb[0].mxu0
    %541 = vdwg.mxu0
    %542 = vmatprep.subr.mxu0 0.0
    %v543 = vand.u32 %v86, 4294901760
    %v544 = vsub.f32 %v86, %v543
    %v545 = vand.u32 %v544, 4294901760
    %546 = vmatpush1.msra.mxu0 %v545
    %547 = vmatprep.subr.mxu0 0.0
    %v548 = vand.u32 %v87, 4294901760
    %v549 = vsub.f32 %v87, %v548
    %v550 = vand.u32 %v549, 4294901760
    %551 = vmatpush1.msra.mxu0 %v550
    %552 = vmatprep.subr.mxu0 0.0
    %v553 = vand.u32 %v88, 4294901760
    %v554 = vsub.f32 %v88, %v553
    %v555 = vand.u32 %v554, 4294901760
    %556 = vmatpush1.msra.mxu0 %v555
    %557 = vmatprep.subr.mxu0 0.0
    %v558 = vand.u32 %v89, 4294901760
    %v559 = vsub.f32 %v89, %v558
    %v560 = vand.u32 %v559, 4294901760
    %561 = vmatpush1.msra.mxu0 %v560
    %562 = vmatprep.subr.mxu0 0.0
    %v563 = vand.u32 %v90, 4294901760
    %v564 = vsub.f32 %v90, %v563
    %v565 = vand.u32 %v564, 4294901760
    %566 = vmatpush1.msra.mxu0 %v565
    %567 = vmatprep.subr.mxu0 0.0
    %v568 = vand.u32 %v91, 4294901760
    %v569 = vsub.f32 %v91, %v568
    %v570 = vand.u32 %v569, 4294901760
    %571 = vmatpush1.msra.mxu0 %v570
    %572 = vmatprep.subr.mxu0 0.0
    %v573 = vand.u32 %v92, 4294901760
    %v574 = vsub.f32 %v92, %v573
    %v575 = vand.u32 %v574, 4294901760
    %576 = vmatpush1.msra.mxu0 %v575
    %577 = vmatprep.subr.mxu0 0.0
    %v578 = vand.u32 %v93, 4294901760
    %v579 = vsub.f32 %v93, %v578
    %v580 = vand.u32 %v579, 4294901760
    %581 = vmatpush1.msra.mxu0 %v580
    %582 = vmatprep.subr.mxu0 0.0
    %v583 = vand.u32 %v94, 4294901760
    %v584 = vsub.f32 %v94, %v583
    %v585 = vand.u32 %v584, 4294901760
    %586 = vmatpush1.msra.mxu0 %v585
    %587 = vmatprep.subr.mxu0 0.0
    %v588 = vand.u32 %v95, 4294901760
    %v589 = vsub.f32 %v95, %v588
    %v590 = vand.u32 %v589, 4294901760
    %591 = vmatpush1.msra.mxu0 %v590
    %592 = vmatprep.subr.mxu0 0.0
    %v593 = vand.u32 %v96, 4294901760
    %v594 = vsub.f32 %v96, %v593
    %v595 = vand.u32 %v594, 4294901760
    %596 = vmatpush1.msra.mxu0 %v595
    %597 = vmatprep.subr.mxu0 0.0
    %v598 = vand.u32 %v97, 4294901760
    %v599 = vsub.f32 %v97, %v598
    %v600 = vand.u32 %v599, 4294901760
    %601 = vmatpush1.msra.mxu0 %v600
    %602 = vmatprep.subr.mxu0 0.0
    %v603 = vand.u32 %v98, 4294901760
    %v604 = vsub.f32 %v98, %v603
    %v605 = vand.u32 %v604, 4294901760
    %606 = vmatpush1.msra.mxu0 %v605
    %607 = vmatprep.subr.mxu0 0.0
    %v608 = vand.u32 %v99, 4294901760
    %v609 = vsub.f32 %v99, %v608
    %v610 = vand.u32 %v609, 4294901760
    %611 = vmatpush1.msra.mxu0 %v610
    %612 = vmatprep.subr.mxu0 0.0
    %v613 = vand.u32 %v100, 4294901760
    %v614 = vsub.f32 %v100, %v613
    %v615 = vand.u32 %v614, 4294901760
    %616 = vmatpush1.msra.mxu0 %v615
    %617 = vmatprep.subr.mxu0 0.0
    %v618 = vand.u32 %v101, 4294901760
    %v619 = vsub.f32 %v101, %v618
    %v620 = vand.u32 %v619, 4294901760
    %621 = vmatpush1.msra.mxu0 %v620
    %622 = vmatprep.subr.mxu0 0.0
    %623 = vmatpush1.msra.mxu0 0.0
    %624 = vmatprep.subr.mxu0 0.0
    %625 = vmatpush1.msra.mxu0 0.0
    %626 = vmatprep.subr.mxu0 0.0
    %627 = vmatpush1.msra.mxu0 0.0
    %628 = vmatprep.subr.mxu0 0.0
    %629 = vmatpush1.msra.mxu0 0.0
    %630 = vmatprep.subr.mxu0 0.0
    %631 = vmatpush1.msra.mxu0 0.0
    %632 = vmatprep.subr.mxu0 0.0
    %633 = vmatpush1.msra.mxu0 0.0
    %634 = vmatprep.subr.mxu0 0.0
    %635 = vmatpush1.msra.mxu0 0.0
    %636 = vmatprep.subr.mxu0 0.0
    %637 = vmatpush1.msra.mxu0 0.0
    %638 = vmatprep.subr.mxu0 0.0
    %639 = vmatpush1.msra.mxu0 0.0
    %640 = vmatprep.subr.mxu0 0.0
    %641 = vmatpush1.msra.mxu0 0.0
    %642 = vmatprep.subr.mxu0 0.0
    %643 = vmatpush1.msra.mxu0 0.0
    %644 = vmatprep.subr.mxu0 0.0
    %645 = vmatpush1.msra.mxu0 0.0
    %646 = vmatprep.subr.mxu0 0.0
    %647 = vmatpush1.msra.mxu0 0.0
    %648 = vmatprep.subr.mxu0 0.0
    %649 = vmatpush1.msra.mxu0 0.0
    %650 = vmatprep.subr.mxu0 0.0
    %651 = vmatpush1.msra.mxu0 0.0
    %652 = vmatprep.subr.mxu0 0.0
    %653 = vmatpush1.msra.mxu0 0.0
    %654 = vmatprep.mubr.f32.mxu0 0.0
    %v655 = vand.u32 %v85, 4294901760
    %656 = vmatmul.mubr.f32.gmra.mrb[0].mxu0 %v655
    %v657 = vpop.f32.mrb[0].mxu0
    %v658 = vadd.f32 %v539, %v657
    %v659 = vpop.f32.mrb[0].mxu0
    %660 = vdwg.mxu0
    %661 = vmatprep.subr.mxu0 0.0
    %v662 = vand.u32 %v86, 4294901760
    %663 = vmatpush1.msra.mxu0 %v662
    %664 = vmatprep.subr.mxu0 0.0
    %v665 = vand.u32 %v87, 4294901760
    %666 = vmatpush1.msra.mxu0 %v665
    %667 = vmatprep.subr.mxu0 0.0
    %v668 = vand.u32 %v88, 4294901760
    %669 = vmatpush1.msra.mxu0 %v668
    %670 = vmatprep.subr.mxu0 0.0
    %v671 = vand.u32 %v89, 4294901760
    %672 = vmatpush1.msra.mxu0 %v671
    %673 = vmatprep.subr.mxu0 0.0
    %v674 = vand.u32 %v90, 4294901760
    %675 = vmatpush1.msra.mxu0 %v674
    %676 = vmatprep.subr.mxu0 0.0
    %v677 = vand.u32 %v91, 4294901760
    %678 = vmatpush1.msra.mxu0 %v677
    %679 = vmatprep.subr.mxu0 0.0
    %v680 = vand.u32 %v92, 4294901760
    %681 = vmatpush1.msra.mxu0 %v680
    %682 = vmatprep.subr.mxu0 0.0
    %v683 = vand.u32 %v93, 4294901760
    %684 = vmatpush1.msra.mxu0 %v683
    %685 = vmatprep.subr.mxu0 0.0
    %v686 = vand.u32 %v94, 4294901760
    %687 = vmatpush1.msra.mxu0 %v686
    %688 = vmatprep.subr.mxu0 0.0
    %v689 = vand.u32 %v95, 4294901760
    %690 = vmatpush1.msra.mxu0 %v689
    %691 = vmatprep.subr.mxu0 0.0
    %v692 = vand.u32 %v96, 4294901760
    %693 = vmatpush1.msra.mxu0 %v692
    %694 = vmatprep.subr.mxu0 0.0
    %v695 = vand.u32 %v97, 4294901760
    %696 = vmatpush1.msra.mxu0 %v695
    %697 = vmatprep.subr.mxu0 0.0
    %v698 = vand.u32 %v98, 4294901760
    %699 = vmatpush1.msra.mxu0 %v698
    %700 = vmatprep.subr.mxu0 0.0
    %v701 = vand.u32 %v99, 4294901760
    %702 = vmatpush1.msra.mxu0 %v701
    %703 = vmatprep.subr.mxu0 0.0
    %v704 = vand.u32 %v100, 4294901760
    %705 = vmatpush1.msra.mxu0 %v704
    %706 = vmatprep.subr.mxu0 0.0
    %v707 = vand.u32 %v101, 4294901760
    %708 = vmatpush1.msra.mxu0 %v707
    %709 = vmatprep.subr.mxu0 0.0
    %710 = vmatpush1.msra.mxu0 0.0
    %711 = vmatprep.subr.mxu0 0.0
    %712 = vmatpush1.msra.mxu0 0.0
    %713 = vmatprep.subr.mxu0 0.0
    %714 = vmatpush1.msra.mxu0 0.0
    %715 = vmatprep.subr.mxu0 0.0
    %716 = vmatpush1.msra.mxu0 0.0
    %717 = vmatprep.subr.mxu0 0.0
    %718 = vmatpush1.msra.mxu0 0.0
    %719 = vmatprep.subr.mxu0 0.0
    %720 = vmatpush1.msra.mxu0 0.0
    %721 = vmatprep.subr.mxu0 0.0
    %722 = vmatpush1.msra.mxu0 0.0
    %723 = vmatprep.subr.mxu0 0.0
    %724 = vmatpush1.msra.mxu0 0.0
    %725 = vmatprep.subr.mxu0 0.0
    %726 = vmatpush1.msra.mxu0 0.0
    %727 = vmatprep.subr.mxu0 0.0
    %728 = vmatpush1.msra.mxu0 0.0
    %729 = vmatprep.subr.mxu0 0.0
    %730 = vmatpush1.msra.mxu0 0.0
    %731 = vmatprep.subr.mxu0 0.0
    %732 = vmatpush1.msra.mxu0 0.0
    %733 = vmatprep.subr.mxu0 0.0
    %734 = vmatpush1.msra.mxu0 0.0
    %735 = vmatprep.subr.mxu0 0.0
    %736 = vmatpush1.msra.mxu0 0.0
    %737 = vmatprep.subr.mxu0 0.0
    %738 = vmatpush1.msra.mxu0 0.0
    %739 = vmatprep.subr.mxu0 0.0
    %740 = vmatpush1.msra.mxu0 0.0
    %741 = vmatprep.mubr.f32.mxu0 0.0
    %v742 = vand.u32 %v85, 4294901760
    %743 = vmatmul.mubr.f32.gmra.mrb[0].mxu0 %v742
    %v744 = vpop.f32.mrb[0].mxu0
    %v745 = vadd.f32 %v658, %v744
    %v746 = vpop.f32.mrb[0].mxu0
    %747 = vdwg.mxu0
    %v748 = vmax.f32 %v745, 0.0
    %v749 = vld [vmem:[#allocation8] sm:$0xff]
    %v750 = vld [vmem:[#allocation8 + $0x8] sm:$0xff]
    %v751 = vld [vmem:[#allocation8 + $0x10] sm:$0xff]
    %v752 = vld [vmem:[#allocation8 + $0x18] sm:$0xff]
    %v753 = vld [vmem:[#allocation8 + $0x20] sm:$0xff]
    %v754 = vld [vmem:[#allocation8 + $0x28] sm:$0xff]
    %v755 = vld [vmem:[#allocation8 + $0x30] sm:$0xff]
    %v756 = vld [vmem:[#allocation8 + $0x38] sm:$0xff]
    %v757 = vld [vmem:[#allocation8 + $0x40] sm:$0xff]
    %v758 = vld [vmem:[#allocation8 + $0x48] sm:$0xff]
    %v759 = vld [vmem:[#allocation8 + $0x50] sm:$0xff]
    %v760 = vld [vmem:[#allocation8 + $0x58] sm:$0xff]
    %v761 = vld [vmem:[#allocation8 + $0x60] sm:$0xff]
    %v762 = vld [vmem:[#allocation8 + $0x68] sm:$0xff]
    %v763 = vld [vmem:[#allocation8 + $0x70] sm:$0xff]
    %v764 = vld [vmem:[#allocation8 + $0x78] sm:$0xff]
    %v765 = vld [vmem:[#allocation5 + $0x1] sm:$0x1]
    %v766 = vlaneseq
    %v767 = vshrl.u32 %v766, 7
    %v768 = vsub.s32 0, %v767
    %v769 = vrot.slane %v765, %v768
    %770 = vmatprep.subr.mxu0 0.0
    %v771 = vand.u32 %v749, 4294901760
    %772 = vmatpush1.msra.mxu0 %v771
    %773 = vmatprep.subr.mxu0 0.0
    %v774 = vand.u32 %v750, 4294901760
    %775 = vmatpush1.msra.mxu0 %v774
    %776 = vmatprep.subr.mxu0 0.0
    %v777 = vand.u32 %v751, 4294901760
    %778 = vmatpush1.msra.mxu0 %v777
    %779 = vmatprep.subr.mxu0 0.0
    %v780 = vand.u32 %v752, 4294901760
    %781 = vmatpush1.msra.mxu0 %v780
    %782 = vmatprep.subr.mxu0 0.0
    %v783 = vand.u32 %v753, 4294901760
    %784 = vmatpush1.msra.mxu0 %v783
    %785 = vmatprep.subr.mxu0 0.0
    %v786 = vand.u32 %v754, 4294901760
    %787 = vmatpush1.msra.mxu0 %v786
    %788 = vmatprep.subr.mxu0 0.0
    %v789 = vand.u32 %v755, 4294901760
    %790 = vmatpush1.msra.mxu0 %v789
    %791 = vmatprep.subr.mxu0 0.0
    %v792 = vand.u32 %v756, 4294901760
    %793 = vmatpush1.msra.mxu0 %v792
    %794 = vmatprep.subr.mxu0 0.0
    %v795 = vand.u32 %v757, 4294901760
    %796 = vmatpush1.msra.mxu0 %v795
    %797 = vmatprep.subr.mxu0 0.0
    %v798 = vand.u32 %v758, 4294901760
    %799 = vmatpush1.msra.mxu0 %v798
    %800 = vmatprep.subr.mxu0 0.0
    %v801 = vand.u32 %v759, 4294901760
    %802 = vmatpush1.msra.mxu0 %v801
    %803 = vmatprep.subr.mxu0 0.0
    %v804 = vand.u32 %v760, 4294901760
    %805 = vmatpush1.msra.mxu0 %v804
    %806 = vmatprep.subr.mxu0 0.0
    %v807 = vand.u32 %v761, 4294901760
    %808 = vmatpush1.msra.mxu0 %v807
    %809 = vmatprep.subr.mxu0 0.0
    %v810 = vand.u32 %v762, 4294901760
    %811 = vmatpush1.msra.mxu0 %v810
    %812 = vmatprep.subr.mxu0 0.0
    %v813 = vand.u32 %v763, 4294901760
    %814 = vmatpush1.msra.mxu0 %v813
    %815 = vmatprep.subr.mxu0 0.0
    %v816 = vand.u32 %v764, 4294901760
    %817 = vmatpush1.msra.mxu0 %v816
    %818 = vmatprep.subr.mxu0 0.0
    %819 = vmatpush1.msra.mxu0 0.0
    %820 = vmatprep.subr.mxu0 0.0
    %821 = vmatpush1.msra.mxu0 0.0
    %822 = vmatprep.subr.mxu0 0.0
    %823 = vmatpush1.msra.mxu0 0.0
    %824 = vmatprep.subr.mxu0 0.0
    %825 = vmatpush1.msra.mxu0 0.0
    %826 = vmatprep.subr.mxu0 0.0
    %827 = vmatpush1.msra.mxu0 0.0
    %828 = vmatprep.subr.mxu0 0.0
    %829 = vmatpush1.msra.mxu0 0.0
    %830 = vmatprep.subr.mxu0 0.0
    %831 = vmatpush1.msra.mxu0 0.0
    %832 = vmatprep.subr.mxu0 0.0
    %833 = vmatpush1.msra.mxu0 0.0
    %834 = vmatprep.subr.mxu0 0.0
    %835 = vmatpush1.msra.mxu0 0.0
    %836 = vmatprep.subr.mxu0 0.0
    %837 = vmatpush1.msra.mxu0 0.0
    %838 = vmatprep.subr.mxu0 0.0
    %839 = vmatpush1.msra.mxu0 0.0
    %840 = vmatprep.subr.mxu0 0.0
    %841 = vmatpush1.msra.mxu0 0.0
    %842 = vmatprep.subr.mxu0 0.0
    %843 = vmatpush1.msra.mxu0 0.0
    %844 = vmatprep.subr.mxu0 0.0
    %845 = vmatpush1.msra.mxu0 0.0
    %846 = vmatprep.subr.mxu0 0.0
    %847 = vmatpush1.msra.mxu0 0.0
    %848 = vmatprep.subr.mxu0 0.0
    %849 = vmatpush1.msra.mxu0 0.0
    %850 = vmatprep.mubr.f32.mxu0 0.0
    %v851 = vand.u32 %v748, 4294901760
    %v852 = vsub.f32 %v748, %v851
    %v853 = vand.u32 %v852, 4294901760
    %v854 = vsub.f32 %v852, %v853
    %v855 = vand.u32 %v854, 4294901760
    %856 = vmatmul.mubr.f32.gmra.mrb[0].mxu0 %v855
    %v857 = vpop.f32.mrb[0].mxu0
    %v858 = vadd.f32 %v769, %v857
    %v859 = vpop.f32.mrb[0].mxu0
    %860 = vdwg.mxu0
    %861 = vmatprep.subr.mxu0 0.0
    %v862 = vand.u32 %v749, 4294901760
    %v863 = vsub.f32 %v749, %v862
    %v864 = vand.u32 %v863, 4294901760
    %v865 = vsub.f32 %v863, %v864
    %v866 = vand.u32 %v865, 4294901760
    %867 = vmatpush1.msra.mxu0 %v866
    %868 = vmatprep.subr.mxu0 0.0
    %v869 = vand.u32 %v750, 4294901760
    %v870 = vsub.f32 %v750, %v869
    %v871 = vand.u32 %v870, 4294901760
    %v872 = vsub.f32 %v870, %v871
    %v873 = vand.u32 %v872, 4294901760
    %874 = vmatpush1.msra.mxu0 %v873
    %875 = vmatprep.subr.mxu0 0.0
    %v876 = vand.u32 %v751, 4294901760
    %v877 = vsub.f32 %v751, %v876
    %v878 = vand.u32 %v877, 4294901760
    %v879 = vsub.f32 %v877, %v878
    %v880 = vand.u32 %v879, 4294901760
    %881 = vmatpush1.msra.mxu0 %v880
    %882 = vmatprep.subr.mxu0 0.0
    %v883 = vand.u32 %v752, 4294901760
    %v884 = vsub.f32 %v752, %v883
    %v885 = vand.u32 %v884, 4294901760
    %v886 = vsub.f32 %v884, %v885
    %v887 = vand.u32 %v886, 4294901760
    %888 = vmatpush1.msra.mxu0 %v887
    %889 = vmatprep.subr.mxu0 0.0
    %v890 = vand.u32 %v753, 4294901760
    %v891 = vsub.f32 %v753, %v890
    %v892 = vand.u32 %v891, 4294901760
    %v893 = vsub.f32 %v891, %v892
    %v894 = vand.u32 %v893, 4294901760
    %895 = vmatpush1.msra.mxu0 %v894
    %896 = vmatprep.subr.mxu0 0.0
    %v897 = vand.u32 %v754, 4294901760
    %v898 = vsub.f32 %v754, %v897
    %v899 = vand.u32 %v898, 4294901760
    %v900 = vsub.f32 %v898, %v899
    %v901 = vand.u32 %v900, 4294901760
    %902 = vmatpush1.msra.mxu0 %v901
    %903 = vmatprep.subr.mxu0 0.0
    %v904 = vand.u32 %v755, 4294901760
    %v905 = vsub.f32 %v755, %v904
    %v906 = vand.u32 %v905, 4294901760
    %v907 = vsub.f32 %v905, %v906
    %v908 = vand.u32 %v907, 4294901760
    %909 = vmatpush1.msra.mxu0 %v908
    %910 = vmatprep.subr.mxu0 0.0
    %v911 = vand.u32 %v756, 4294901760
    %v912 = vsub.f32 %v756, %v911
    %v913 = vand.u32 %v912, 4294901760
    %v914 = vsub.f32 %v912, %v913
    %v915 = vand.u32 %v914, 4294901760
    %916 = vmatpush1.msra.mxu0 %v915
    %917 = vmatprep.subr.mxu0 0.0
    %v918 = vand.u32 %v757, 4294901760
    %v919 = vsub.f32 %v757, %v918
    %v920 = vand.u32 %v919, 4294901760
    %v921 = vsub.f32 %v919, %v920
    %v922 = vand.u32 %v921, 4294901760
    %923 = vmatpush1.msra.mxu0 %v922
    %924 = vmatprep.subr.mxu0 0.0
    %v925 = vand.u32 %v758, 4294901760
    %v926 = vsub.f32 %v758, %v925
    %v927 = vand.u32 %v926, 4294901760
    %v928 = vsub.f32 %v926, %v927
    %v929 = vand.u32 %v928, 4294901760
    %930 = vmatpush1.msra.mxu0 %v929
    %931 = vmatprep.subr.mxu0 0.0
    %v932 = vand.u32 %v759, 4294901760
    %v933 = vsub.f32 %v759, %v932
    %v934 = vand.u32 %v933, 4294901760
    %v935 = vsub.f32 %v933, %v934
    %v936 = vand.u32 %v935, 4294901760
    %937 = vmatpush1.msra.mxu0 %v936
    %938 = vmatprep.subr.mxu0 0.0
    %v939 = vand.u32 %v760, 4294901760
    %v940 = vsub.f32 %v760, %v939
    %v941 = vand.u32 %v940, 4294901760
    %v942 = vsub.f32 %v940, %v941
    %v943 = vand.u32 %v942, 4294901760
    %944 = vmatpush1.msra.mxu0 %v943
    %945 = vmatprep.subr.mxu0 0.0
    %v946 = vand.u32 %v761, 4294901760
    %v947 = vsub.f32 %v761, %v946
    %v948 = vand.u32 %v947, 4294901760
    %v949 = vsub.f32 %v947, %v948
    %v950 = vand.u32 %v949, 4294901760
    %951 = vmatpush1.msra.mxu0 %v950
    %952 = vmatprep.subr.mxu0 0.0
    %v953 = vand.u32 %v762, 4294901760
    %v954 = vsub.f32 %v762, %v953
    %v955 = vand.u32 %v954, 4294901760
    %v956 = vsub.f32 %v954, %v955
    %v957 = vand.u32 %v956, 4294901760
    %958 = vmatpush1.msra.mxu0 %v957
    %959 = vmatprep.subr.mxu0 0.0
    %v960 = vand.u32 %v763, 4294901760
    %v961 = vsub.f32 %v763, %v960
    %v962 = vand.u32 %v961, 4294901760
    %v963 = vsub.f32 %v961, %v962
    %v964 = vand.u32 %v963, 4294901760
    %965 = vmatpush1.msra.mxu0 %v964
    %966 = vmatprep.subr.mxu0 0.0
    %v967 = vand.u32 %v764, 4294901760
    %v968 = vsub.f32 %v764, %v967
    %v969 = vand.u32 %v968, 4294901760
    %v970 = vsub.f32 %v968, %v969
    %v971 = vand.u32 %v970, 4294901760
    %972 = vmatpush1.msra.mxu0 %v971
    %973 = vmatprep.subr.mxu0 0.0
    %974 = vmatpush1.msra.mxu0 0.0
    %975 = vmatprep.subr.mxu0 0.0
    %976 = vmatpush1.msra.mxu0 0.0
    %977 = vmatprep.subr.mxu0 0.0
    %978 = vmatpush1.msra.mxu0 0.0
    %979 = vmatprep.subr.mxu0 0.0
    %980 = vmatpush1.msra.mxu0 0.0
    %981 = vmatprep.subr.mxu0 0.0
    %982 = vmatpush1.msra.mxu0 0.0
    %983 = vmatprep.subr.mxu0 0.0
    %984 = vmatpush1.msra.mxu0 0.0
    %985 = vmatprep.subr.mxu0 0.0
    %986 = vmatpush1.msra.mxu0 0.0
    %987 = vmatprep.subr.mxu0 0.0
    %988 = vmatpush1.msra.mxu0 0.0
    %989 = vmatprep.subr.mxu0 0.0
    %990 = vmatpush1.msra.mxu0 0.0
    %991 = vmatprep.subr.mxu0 0.0
    %992 = vmatpush1.msra.mxu0 0.0
    %993 = vmatprep.subr.mxu0 0.0
    %994 = vmatpush1.msra.mxu0 0.0
    %995 = vmatprep.subr.mxu0 0.0
    %996 = vmatpush1.msra.mxu0 0.0
    %997 = vmatprep.subr.mxu0 0.0
    %998 = vmatpush1.msra.mxu0 0.0
    %999 = vmatprep.subr.mxu0 0.0
    %1000 = vmatpush1.msra.mxu0 0.0
    %1001 = vmatprep.subr.mxu0 0.0
    %1002 = vmatpush1.msra.mxu0 0.0
    %1003 = vmatprep.subr.mxu0 0.0
    %1004 = vmatpush1.msra.mxu0 0.0
    %1005 = vmatprep.mubr.f32.mxu0 0.0
    %v1006 = vand.u32 %v748, 4294901760
    %1007 = vmatmul.mubr.f32.gmra.mrb[0].mxu0 %v1006
    %v1008 = vpop.f32.mrb[0].mxu0
    %v1009 = vadd.f32 %v858, %v1008
    %v1010 = vpop.f32.mrb[0].mxu0
    %1011 = vdwg.mxu0
    %1012 = vmatprep.subr.mxu0 0.0
    %v1013 = vand.u32 %v749, 4294901760
    %v1014 = vsub.f32 %v749, %v1013
    %1015 = vmatpush1.msra.mxu0 %v1014
    %1016 = vmatprep.subr.mxu0 0.0
    %v1017 = vand.u32 %v750, 4294901760
    %v1018 = vsub.f32 %v750, %v1017
    %1019 = vmatpush1.msra.mxu0 %v1018
    %1020 = vmatprep.subr.mxu0 0.0
    %v1021 = vand.u32 %v751, 4294901760
    %v1022 = vsub.f32 %v751, %v1021
    %1023 = vmatpush1.msra.mxu0 %v1022
    %1024 = vmatprep.subr.mxu0 0.0
    %v1025 = vand.u32 %v752, 4294901760
    %v1026 = vsub.f32 %v752, %v1025
    %1027 = vmatpush1.msra.mxu0 %v1026
    %1028 = vmatprep.subr.mxu0 0.0
    %v1029 = vand.u32 %v753, 4294901760
    %v1030 = vsub.f32 %v753, %v1029
    %1031 = vmatpush1.msra.mxu0 %v1030
    %1032 = vmatprep.subr.mxu0 0.0
    %v1033 = vand.u32 %v754, 4294901760
    %v1034 = vsub.f32 %v754, %v1033
    %1035 = vmatpush1.msra.mxu0 %v1034
    %1036 = vmatprep.subr.mxu0 0.0
    %v1037 = vand.u32 %v755, 4294901760
    %v1038 = vsub.f32 %v755, %v1037
    %1039 = vmatpush1.msra.mxu0 %v1038
    %1040 = vmatprep.subr.mxu0 0.0
    %v1041 = vand.u32 %v756, 4294901760
    %v1042 = vsub.f32 %v756, %v1041
    %1043 = vmatpush1.msra.mxu0 %v1042
    %1044 = vmatprep.subr.mxu0 0.0
    %v1045 = vand.u32 %v757, 4294901760
    %v1046 = vsub.f32 %v757, %v1045
    %1047 = vmatpush1.msra.mxu0 %v1046
    %1048 = vmatprep.subr.mxu0 0.0
    %v1049 = vand.u32 %v758, 4294901760
    %v1050 = vsub.f32 %v758, %v1049
    %1051 = vmatpush1.msra.mxu0 %v1050
    %1052 = vmatprep.subr.mxu0 0.0
    %v1053 = vand.u32 %v759, 4294901760
    %v1054 = vsub.f32 %v759, %v1053
    %1055 = vmatpush1.msra.mxu0 %v1054
    %1056 = vmatprep.subr.mxu0 0.0
    %v1057 = vand.u32 %v760, 4294901760
    %v1058 = vsub.f32 %v760, %v1057
    %1059 = vmatpush1.msra.mxu0 %v1058
    %1060 = vmatprep.subr.mxu0 0.0
    %v1061 = vand.u32 %v761, 4294901760
    %v1062 = vsub.f32 %v761, %v1061
    %1063 = vmatpush1.msra.mxu0 %v1062
    %1064 = vmatprep.subr.mxu0 0.0
    %v1065 = vand.u32 %v762, 4294901760
    %v1066 = vsub.f32 %v762, %v1065
    %1067 = vmatpush1.msra.mxu0 %v1066
    %1068 = vmatprep.subr.mxu0 0.0
    %v1069 = vand.u32 %v763, 4294901760
    %v1070 = vsub.f32 %v763, %v1069
    %1071 = vmatpush1.msra.mxu0 %v1070
    %1072 = vmatprep.subr.mxu0 0.0
    %v1073 = vand.u32 %v764, 4294901760
    %v1074 = vsub.f32 %v764, %v1073
    %1075 = vmatpush1.msra.mxu0 %v1074
    %1076 = vmatprep.subr.mxu0 0.0
    %1077 = vmatpush1.msra.mxu0 0.0
    %1078 = vmatprep.subr.mxu0 0.0
    %1079 = vmatpush1.msra.mxu0 0.0
    %1080 = vmatprep.subr.mxu0 0.0
    %1081 = vmatpush1.msra.mxu0 0.0
    %1082 = vmatprep.subr.mxu0 0.0
    %1083 = vmatpush1.msra.mxu0 0.0
    %1084 = vmatprep.subr.mxu0 0.0
    %1085 = vmatpush1.msra.mxu0 0.0
    %1086 = vmatprep.subr.mxu0 0.0
    %1087 = vmatpush1.msra.mxu0 0.0
    %1088 = vmatprep.subr.mxu0 0.0
    %1089 = vmatpush1.msra.mxu0 0.0
    %1090 = vmatprep.subr.mxu0 0.0
    %1091 = vmatpush1.msra.mxu0 0.0
    %1092 = vmatprep.subr.mxu0 0.0
    %1093 = vmatpush1.msra.mxu0 0.0
    %1094 = vmatprep.subr.mxu0 0.0
    %1095 = vmatpush1.msra.mxu0 0.0
    %1096 = vmatprep.subr.mxu0 0.0
    %1097 = vmatpush1.msra.mxu0 0.0
    %1098 = vmatprep.subr.mxu0 0.0
    %1099 = vmatpush1.msra.mxu0 0.0
    %1100 = vmatprep.subr.mxu0 0.0
    %1101 = vmatpush1.msra.mxu0 0.0
    %1102 = vmatprep.subr.mxu0 0.0
    %1103 = vmatpush1.msra.mxu0 0.0
    %1104 = vmatprep.subr.mxu0 0.0
    %1105 = vmatpush1.msra.mxu0 0.0
    %1106 = vmatprep.subr.mxu0 0.0
    %1107 = vmatpush1.msra.mxu0 0.0
    %1108 = vmatprep.mubr.f32.mxu0 0.0
    %v1109 = vand.u32 %v748, 4294901760
    %v1110 = vsub.f32 %v748, %v1109
    %1111 = vmatmul.mubr.f32.gmra.mrb[0].mxu0 %v1110
    %v1112 = vpop.f32.mrb[0].mxu0
    %v1113 = vadd.f32 %v1009, %v1112
    %v1114 = vpop.f32.mrb[0].mxu0
    %1115 = vdwg.mxu0
    %1116 = vmatprep.subr.mxu0 0.0
    %v1117 = vand.u32 %v749, 4294901760
    %1118 = vmatpush1.msra.mxu0 %v1117
    %1119 = vmatprep.subr.mxu0 0.0
    %v1120 = vand.u32 %v750, 4294901760
    %1121 = vmatpush1.msra.mxu0 %v1120
    %1122 = vmatprep.subr.mxu0 0.0
    %v1123 = vand.u32 %v751, 4294901760
    %1124 = vmatpush1.msra.mxu0 %v1123
    %1125 = vmatprep.subr.mxu0 0.0
    %v1126 = vand.u32 %v752, 4294901760
    %1127 = vmatpush1.msra.mxu0 %v1126
    %1128 = vmatprep.subr.mxu0 0.0
    %v1129 = vand.u32 %v753, 4294901760
    %1130 = vmatpush1.msra.mxu0 %v1129
    %1131 = vmatprep.subr.mxu0 0.0
    %v1132 = vand.u32 %v754, 4294901760
    %1133 = vmatpush1.msra.mxu0 %v1132
    %1134 = vmatprep.subr.mxu0 0.0
    %v1135 = vand.u32 %v755, 4294901760
    %1136 = vmatpush1.msra.mxu0 %v1135
    %1137 = vmatprep.subr.mxu0 0.0
    %v1138 = vand.u32 %v756, 4294901760
    %1139 = vmatpush1.msra.mxu0 %v1138
    %1140 = vmatprep.subr.mxu0 0.0
    %v1141 = vand.u32 %v757, 4294901760
    %1142 = vmatpush1.msra.mxu0 %v1141
    %1143 = vmatprep.subr.mxu0 0.0
    %v1144 = vand.u32 %v758, 4294901760
    %1145 = vmatpush1.msra.mxu0 %v1144
    %1146 = vmatprep.subr.mxu0 0.0
    %v1147 = vand.u32 %v759, 4294901760
    %1148 = vmatpush1.msra.mxu0 %v1147
    %1149 = vmatprep.subr.mxu0 0.0
    %v1150 = vand.u32 %v760, 4294901760
    %1151 = vmatpush1.msra.mxu0 %v1150
    %1152 = vmatprep.subr.mxu0 0.0
    %v1153 = vand.u32 %v761, 4294901760
    %1154 = vmatpush1.msra.mxu0 %v1153
    %1155 = vmatprep.subr.mxu0 0.0
    %v1156 = vand.u32 %v762, 4294901760
    %1157 = vmatpush1.msra.mxu0 %v1156
    %1158 = vmatprep.subr.mxu0 0.0
    %v1159 = vand.u32 %v763, 4294901760
    %1160 = vmatpush1.msra.mxu0 %v1159
    %1161 = vmatprep.subr.mxu0 0.0
    %v1162 = vand.u32 %v764, 4294901760
    %1163 = vmatpush1.msra.mxu0 %v1162
    %1164 = vmatprep.subr.mxu0 0.0
    %1165 = vmatpush1.msra.mxu0 0.0
    %1166 = vmatprep.subr.mxu0 0.0
    %1167 = vmatpush1.msra.mxu0 0.0
    %1168 = vmatprep.subr.mxu0 0.0
    %1169 = vmatpush1.msra.mxu0 0.0
    %1170 = vmatprep.subr.mxu0 0.0
    %1171 = vmatpush1.msra.mxu0 0.0
    %1172 = vmatprep.subr.mxu0 0.0
    %1173 = vmatpush1.msra.mxu0 0.0
    %1174 = vmatprep.subr.mxu0 0.0
    %1175 = vmatpush1.msra.mxu0 0.0
    %1176 = vmatprep.subr.mxu0 0.0
    %1177 = vmatpush1.msra.mxu0 0.0
    %1178 = vmatprep.subr.mxu0 0.0
    %1179 = vmatpush1.msra.mxu0 0.0
    %1180 = vmatprep.subr.mxu0 0.0
    %1181 = vmatpush1.msra.mxu0 0.0
    %1182 = vmatprep.subr.mxu0 0.0
    %1183 = vmatpush1.msra.mxu0 0.0
    %1184 = vmatprep.subr.mxu0 0.0
    %1185 = vmatpush1.msra.mxu0 0.0
    %1186 = vmatprep.subr.mxu0 0.0
    %1187 = vmatpush1.msra.mxu0 0.0
    %1188 = vmatprep.subr.mxu0 0.0
    %1189 = vmatpush1.msra.mxu0 0.0
    %1190 = vmatprep.subr.mxu0 0.0
    %1191 = vmatpush1.msra.mxu0 0.0
    %1192 = vmatprep.subr.mxu0 0.0
    %1193 = vmatpush1.msra.mxu0 0.0
    %1194 = vmatprep.subr.mxu0 0.0
    %1195 = vmatpush1.msra.mxu0 0.0
    %1196 = vmatprep.mubr.f32.mxu0 0.0
    %v1197 = vand.u32 %v748, 4294901760
    %v1198 = vsub.f32 %v748, %v1197
    %v1199 = vand.u32 %v1198, 4294901760
    %1200 = vmatmul.mubr.f32.gmra.mrb[0].mxu0 %v1199
    %v1201 = vpop.f32.mrb[0].mxu0
    %v1202 = vadd.f32 %v1113, %v1201
    %v1203 = vpop.f32.mrb[0].mxu0
    %1204 = vdwg.mxu0
    %1205 = vmatprep.subr.mxu0 0.0
    %v1206 = vand.u32 %v749, 4294901760
    %v1207 = vsub.f32 %v749, %v1206
    %v1208 = vand.u32 %v1207, 4294901760
    %1209 = vmatpush1.msra.mxu0 %v1208
    %1210 = vmatprep.subr.mxu0 0.0
    %v1211 = vand.u32 %v750, 4294901760
    %v1212 = vsub.f32 %v750, %v1211
    %v1213 = vand.u32 %v1212, 4294901760
    %1214 = vmatpush1.msra.mxu0 %v1213
    %1215 = vmatprep.subr.mxu0 0.0
    %v1216 = vand.u32 %v751, 4294901760
    %v1217 = vsub.f32 %v751, %v1216
    %v1218 = vand.u32 %v1217, 4294901760
    %1219 = vmatpush1.msra.mxu0 %v1218
    %1220 = vmatprep.subr.mxu0 0.0
    %v1221 = vand.u32 %v752, 4294901760
    %v1222 = vsub.f32 %v752, %v1221
    %v1223 = vand.u32 %v1222, 4294901760
    %1224 = vmatpush1.msra.mxu0 %v1223
    %1225 = vmatprep.subr.mxu0 0.0
    %v1226 = vand.u32 %v753, 4294901760
    %v1227 = vsub.f32 %v753, %v1226
    %v1228 = vand.u32 %v1227, 4294901760
    %1229 = vmatpush1.msra.mxu0 %v1228
    %1230 = vmatprep.subr.mxu0 0.0
    %v1231 = vand.u32 %v754, 4294901760
    %v1232 = vsub.f32 %v754, %v1231
    %v1233 = vand.u32 %v1232, 4294901760
    %1234 = vmatpush1.msra.mxu0 %v1233
    %1235 = vmatprep.subr.mxu0 0.0
    %v1236 = vand.u32 %v755, 4294901760
    %v1237 = vsub.f32 %v755, %v1236
    %v1238 = vand.u32 %v1237, 4294901760
    %1239 = vmatpush1.msra.mxu0 %v1238
    %1240 = vmatprep.subr.mxu0 0.0
    %v1241 = vand.u32 %v756, 4294901760
    %v1242 = vsub.f32 %v756, %v1241
    %v1243 = vand.u32 %v1242, 4294901760
    %1244 = vmatpush1.msra.mxu0 %v1243
    %1245 = vmatprep.subr.mxu0 0.0
    %v1246 = vand.u32 %v757, 4294901760
    %v1247 = vsub.f32 %v757, %v1246
    %v1248 = vand.u32 %v1247, 4294901760
    %1249 = vmatpush1.msra.mxu0 %v1248
    %1250 = vmatprep.subr.mxu0 0.0
    %v1251 = vand.u32 %v758, 4294901760
    %v1252 = vsub.f32 %v758, %v1251
    %v1253 = vand.u32 %v1252, 4294901760
    %1254 = vmatpush1.msra.mxu0 %v1253
    %1255 = vmatprep.subr.mxu0 0.0
    %v1256 = vand.u32 %v759, 4294901760
    %v1257 = vsub.f32 %v759, %v1256
    %v1258 = vand.u32 %v1257, 4294901760
    %1259 = vmatpush1.msra.mxu0 %v1258
    %1260 = vmatprep.subr.mxu0 0.0
    %v1261 = vand.u32 %v760, 4294901760
    %v1262 = vsub.f32 %v760, %v1261
    %v1263 = vand.u32 %v1262, 4294901760
    %1264 = vmatpush1.msra.mxu0 %v1263
    %1265 = vmatprep.subr.mxu0 0.0
    %v1266 = vand.u32 %v761, 4294901760
    %v1267 = vsub.f32 %v761, %v1266
    %v1268 = vand.u32 %v1267, 4294901760
    %1269 = vmatpush1.msra.mxu0 %v1268
    %1270 = vmatprep.subr.mxu0 0.0
    %v1271 = vand.u32 %v762, 4294901760
    %v1272 = vsub.f32 %v762, %v1271
    %v1273 = vand.u32 %v1272, 4294901760
    %1274 = vmatpush1.msra.mxu0 %v1273
    %1275 = vmatprep.subr.mxu0 0.0
    %v1276 = vand.u32 %v763, 4294901760
    %v1277 = vsub.f32 %v763, %v1276
    %v1278 = vand.u32 %v1277, 4294901760
    %1279 = vmatpush1.msra.mxu0 %v1278
    %1280 = vmatprep.subr.mxu0 0.0
    %v1281 = vand.u32 %v764, 4294901760
    %v1282 = vsub.f32 %v764, %v1281
    %v1283 = vand.u32 %v1282, 4294901760
    %1284 = vmatpush1.msra.mxu0 %v1283
    %1285 = vmatprep.subr.mxu0 0.0
    %1286 = vmatpush1.msra.mxu0 0.0
    %1287 = vmatprep.subr.mxu0 0.0
    %1288 = vmatpush1.msra.mxu0 0.0
    %1289 = vmatprep.subr.mxu0 0.0
    %1290 = vmatpush1.msra.mxu0 0.0
    %1291 = vmatprep.subr.mxu0 0.0
    %1292 = vmatpush1.msra.mxu0 0.0
    %1293 = vmatprep.subr.mxu0 0.0
    %1294 = vmatpush1.msra.mxu0 0.0
    %1295 = vmatprep.subr.mxu0 0.0
    %1296 = vmatpush1.msra.mxu0 0.0
    %1297 = vmatprep.subr.mxu0 0.0
    %1298 = vmatpush1.msra.mxu0 0.0
    %1299 = vmatprep.subr.mxu0 0.0
    %1300 = vmatpush1.msra.mxu0 0.0
    %1301 = vmatprep.subr.mxu0 0.0
    %1302 = vmatpush1.msra.mxu0 0.0
    %1303 = vmatprep.subr.mxu0 0.0
    %1304 = vmatpush1.msra.mxu0 0.0
    %1305 = vmatprep.subr.mxu0 0.0
    %1306 = vmatpush1.msra.mxu0 0.0
    %1307 = vmatprep.subr.mxu0 0.0
    %1308 = vmatpush1.msra.mxu0 0.0
    %1309 = vmatprep.subr.mxu0 0.0
    %1310 = vmatpush1.msra.mxu0 0.0
    %1311 = vmatprep.subr.mxu0 0.0
    %1312 = vmatpush1.msra.mxu0 0.0
    %1313 = vmatprep.subr.mxu0 0.0
    %1314 = vmatpush1.msra.mxu0 0.0
    %1315 = vmatprep.subr.mxu0 0.0
    %1316 = vmatpush1.msra.mxu0 0.0
    %1317 = vmatprep.mubr.f32.mxu0 0.0
    %v1318 = vand.u32 %v748, 4294901760
    %1319 = vmatmul.mubr.f32.gmra.mrb[0].mxu0 %v1318
    %v1320 = vpop.f32.mrb[0].mxu0
    %v1321 = vadd.f32 %v1202, %v1320
    %v1322 = vpop.f32.mrb[0].mxu0
    %1323 = vdwg.mxu0
    %1324 = vmatprep.subr.mxu0 0.0
    %v1325 = vand.u32 %v749, 4294901760
    %1326 = vmatpush1.msra.mxu0 %v1325
    %1327 = vmatprep.subr.mxu0 0.0
    %v1328 = vand.u32 %v750, 4294901760
    %1329 = vmatpush1.msra.mxu0 %v1328
    %1330 = vmatprep.subr.mxu0 0.0
    %v1331 = vand.u32 %v751, 4294901760
    %1332 = vmatpush1.msra.mxu0 %v1331
    %1333 = vmatprep.subr.mxu0 0.0
    %v1334 = vand.u32 %v752, 4294901760
    %1335 = vmatpush1.msra.mxu0 %v1334
    %1336 = vmatprep.subr.mxu0 0.0
    %v1337 = vand.u32 %v753, 4294901760
    %1338 = vmatpush1.msra.mxu0 %v1337
    %1339 = vmatprep.subr.mxu0 0.0
    %v1340 = vand.u32 %v754, 4294901760
    %1341 = vmatpush1.msra.mxu0 %v1340
    %1342 = vmatprep.subr.mxu0 0.0
    %v1343 = vand.u32 %v755, 4294901760
    %1344 = vmatpush1.msra.mxu0 %v1343
    %1345 = vmatprep.subr.mxu0 0.0
    %v1346 = vand.u32 %v756, 4294901760
    %1347 = vmatpush1.msra.mxu0 %v1346
    %1348 = vmatprep.subr.mxu0 0.0
    %v1349 = vand.u32 %v757, 4294901760
    %1350 = vmatpush1.msra.mxu0 %v1349
    %1351 = vmatprep.subr.mxu0 0.0
    %v1352 = vand.u32 %v758, 4294901760
    %1353 = vmatpush1.msra.mxu0 %v1352
    %1354 = vmatprep.subr.mxu0 0.0
    %v1355 = vand.u32 %v759, 4294901760
    %1356 = vmatpush1.msra.mxu0 %v1355
    %1357 = vmatprep.subr.mxu0 0.0
    %v1358 = vand.u32 %v760, 4294901760
    %1359 = vmatpush1.msra.mxu0 %v1358
    %1360 = vmatprep.subr.mxu0 0.0
    %v1361 = vand.u32 %v761, 4294901760
    %1362 = vmatpush1.msra.mxu0 %v1361
    %1363 = vmatprep.subr.mxu0 0.0
    %v1364 = vand.u32 %v762, 4294901760
    %1365 = vmatpush1.msra.mxu0 %v1364
    %1366 = vmatprep.subr.mxu0 0.0
    %v1367 = vand.u32 %v763, 4294901760
    %1368 = vmatpush1.msra.mxu0 %v1367
    %1369 = vmatprep.subr.mxu0 0.0
    %v1370 = vand.u32 %v764, 4294901760
    %1371 = vmatpush1.msra.mxu0 %v1370
    %1372 = vmatprep.subr.mxu0 0.0
    %1373 = vmatpush1.msra.mxu0 0.0
    %1374 = vmatprep.subr.mxu0 0.0
    %1375 = vmatpush1.msra.mxu0 0.0
    %1376 = vmatprep.subr.mxu0 0.0
    %1377 = vmatpush1.msra.mxu0 0.0
    %1378 = vmatprep.subr.mxu0 0.0
    %1379 = vmatpush1.msra.mxu0 0.0
    %1380 = vmatprep.subr.mxu0 0.0
    %1381 = vmatpush1.msra.mxu0 0.0
    %1382 = vmatprep.subr.mxu0 0.0
    %1383 = vmatpush1.msra.mxu0 0.0
    %1384 = vmatprep.subr.mxu0 0.0
    %1385 = vmatpush1.msra.mxu0 0.0
    %1386 = vmatprep.subr.mxu0 0.0
    %1387 = vmatpush1.msra.mxu0 0.0
    %1388 = vmatprep.subr.mxu0 0.0
    %1389 = vmatpush1.msra.mxu0 0.0
    %1390 = vmatprep.subr.mxu0 0.0
    %1391 = vmatpush1.msra.mxu0 0.0
    %1392 = vmatprep.subr.mxu0 0.0
    %1393 = vmatpush1.msra.mxu0 0.0
    %1394 = vmatprep.subr.mxu0 0.0
    %1395 = vmatpush1.msra.mxu0 0.0
    %1396 = vmatprep.subr.mxu0 0.0
    %1397 = vmatpush1.msra.mxu0 0.0
    %1398 = vmatprep.subr.mxu0 0.0
    %1399 = vmatpush1.msra.mxu0 0.0
    %1400 = vmatprep.subr.mxu0 0.0
    %1401 = vmatpush1.msra.mxu0 0.0
    %1402 = vmatprep.subr.mxu0 0.0
    %1403 = vmatpush1.msra.mxu0 0.0
    %1404 = vmatprep.mubr.f32.mxu0 0.0
    %v1405 = vand.u32 %v748, 4294901760
    %1406 = vmatmul.mubr.f32.gmra.mrb[0].mxu0 %v1405
    %v1407 = vpop.f32.mrb[0].mxu0
    %v1408 = vadd.f32 %v1321, %v1407
    %v1409 = vpop.f32.mrb[0].mxu0
    %1410 = vdwg.mxu0
    %v1411 = vmax.f32 %v1408, 0.0
    %v1412 = vld [vmem:[#allocation10] sm:$0xff]
    %v1413 = vld [vmem:[#allocation10 + $0x8] sm:$0xff]
    %v1414 = vld [vmem:[#allocation10 + $0x10] sm:$0xff]
    %v1415 = vld [vmem:[#allocation10 + $0x18] sm:$0xff]
    %v1416 = vld [vmem:[#allocation10 + $0x20] sm:$0xff]
    %v1417 = vld [vmem:[#allocation10 + $0x28] sm:$0xff]
    %v1418 = vld [vmem:[#allocation10 + $0x30] sm:$0xff]
    %v1419 = vld [vmem:[#allocation10 + $0x38] sm:$0xff]
    %v1420 = vld [vmem:[#allocation10 + $0x40] sm:$0xff]
    %v1421 = vld [vmem:[#allocation10 + $0x48] sm:$0xff]
    %v1422 = vld [vmem:[#allocation10 + $0x50] sm:$0xff]
    %v1423 = vld [vmem:[#allocation10 + $0x58] sm:$0xff]
    %v1424 = vld [vmem:[#allocation10 + $0x60] sm:$0xff]
    %v1425 = vld [vmem:[#allocation10 + $0x68] sm:$0xff]
    %v1426 = vld [vmem:[#allocation10 + $0x70] sm:$0xff]
    %v1427 = vld [vmem:[#allocation10 + $0x78] sm:$0xff]
    %v1428 = vld [vmem:[#allocation5 + $0x2] sm:$0x1]
    %v1429 = vlaneseq
    %v1430 = vshrl.u32 %v1429, 7
    %v1431 = vsub.s32 0, %v1430
    %v1432 = vrot.slane %v1428, %v1431
    %1433 = vmatprep.subr.mxu0 0.0
    %v1434 = vand.u32 %v1412, 4294901760
    %1435 = vmatpush1.msra.mxu0 %v1434
    %1436 = vmatprep.subr.mxu0 0.0
    %v1437 = vand.u32 %v1413, 4294901760
    %1438 = vmatpush1.msra.mxu0 %v1437
    %1439 = vmatprep.subr.mxu0 0.0
    %v1440 = vand.u32 %v1414, 4294901760
    %1441 = vmatpush1.msra.mxu0 %v1440
    %1442 = vmatprep.subr.mxu0 0.0
    %v1443 = vand.u32 %v1415, 4294901760
    %1444 = vmatpush1.msra.mxu0 %v1443
    %1445 = vmatprep.subr.mxu0 0.0
    %v1446 = vand.u32 %v1416, 4294901760
    %1447 = vmatpush1.msra.mxu0 %v1446
    %1448 = vmatprep.subr.mxu0 0.0
    %v1449 = vand.u32 %v1417, 4294901760
    %1450 = vmatpush1.msra.mxu0 %v1449
    %1451 = vmatprep.subr.mxu0 0.0
    %v1452 = vand.u32 %v1418, 4294901760
    %1453 = vmatpush1.msra.mxu0 %v1452
    %1454 = vmatprep.subr.mxu0 0.0
    %v1455 = vand.u32 %v1419, 4294901760
    %1456 = vmatpush1.msra.mxu0 %v1455
    %1457 = vmatprep.subr.mxu0 0.0
    %v1458 = vand.u32 %v1420, 4294901760
    %1459 = vmatpush1.msra.mxu0 %v1458
    %1460 = vmatprep.subr.mxu0 0.0
    %v1461 = vand.u32 %v1421, 4294901760
    %1462 = vmatpush1.msra.mxu0 %v1461
    %1463 = vmatprep.subr.mxu0 0.0
    %v1464 = vand.u32 %v1422, 4294901760
    %1465 = vmatpush1.msra.mxu0 %v1464
    %1466 = vmatprep.subr.mxu0 0.0
    %v1467 = vand.u32 %v1423, 4294901760
    %1468 = vmatpush1.msra.mxu0 %v1467
    %1469 = vmatprep.subr.mxu0 0.0
    %v1470 = vand.u32 %v1424, 4294901760
    %1471 = vmatpush1.msra.mxu0 %v1470
    %1472 = vmatprep.subr.mxu0 0.0
    %v1473 = vand.u32 %v1425, 4294901760
    %1474 = vmatpush1.msra.mxu0 %v1473
    %1475 = vmatprep.subr.mxu0 0.0
    %v1476 = vand.u32 %v1426, 4294901760
    %1477 = vmatpush1.msra.mxu0 %v1476
    %1478 = vmatprep.subr.mxu0 0.0
    %v1479 = vand.u32 %v1427, 4294901760
    %1480 = vmatpush1.msra.mxu0 %v1479
    %1481 = vmatprep.subr.mxu0 0.0
    %1482 = vmatpush1.msra.mxu0 0.0
    %1483 = vmatprep.subr.mxu0 0.0
    %1484 = vmatpush1.msra.mxu0 0.0
    %1485 = vmatprep.subr.mxu0 0.0
    %1486 = vmatpush1.msra.mxu0 0.0
    %1487 = vmatprep.subr.mxu0 0.0
    %1488 = vmatpush1.msra.mxu0 0.0
    %1489 = vmatprep.subr.mxu0 0.0
    %1490 = vmatpush1.msra.mxu0 0.0
    %1491 = vmatprep.subr.mxu0 0.0
    %1492 = vmatpush1.msra.mxu0 0.0
    %1493 = vmatprep.subr.mxu0 0.0
    %1494 = vmatpush1.msra.mxu0 0.0
    %1495 = vmatprep.subr.mxu0 0.0
    %1496 = vmatpush1.msra.mxu0 0.0
    %1497 = vmatprep.subr.mxu0 0.0
    %1498 = vmatpush1.msra.mxu0 0.0
    %1499 = vmatprep.subr.mxu0 0.0
    %1500 = vmatpush1.msra.mxu0 0.0
    %1501 = vmatprep.subr.mxu0 0.0
    %1502 = vmatpush1.msra.mxu0 0.0
    %1503 = vmatprep.subr.mxu0 0.0
    %1504 = vmatpush1.msra.mxu0 0.0
    %1505 = vmatprep.subr.mxu0 0.0
    %1506 = vmatpush1.msra.mxu0 0.0
    %1507 = vmatprep.subr.mxu0 0.0
    %1508 = vmatpush1.msra.mxu0 0.0
    %1509 = vmatprep.subr.mxu0 0.0
    %1510 = vmatpush1.msra.mxu0 0.0
    %1511 = vmatprep.subr.mxu0 0.0
    %1512 = vmatpush1.msra.mxu0 0.0
    %1513 = vmatprep.mubr.f32.mxu0 0.0
    %v1514 = vand.u32 %v1411, 4294901760
    %v1515 = vsub.f32 %v1411, %v1514
    %v1516 = vand.u32 %v1515, 4294901760
    %v1517 = vsub.f32 %v1515, %v1516
    %v1518 = vand.u32 %v1517, 4294901760
    %1519 = vmatmul.mubr.f32.gmra.mrb[0].mxu0 %v1518
    %v1520 = vpop.f32.mrb[0].mxu0
    %v1521 = vadd.f32 %v1432, %v1520
    %v1522 = vpop.f32.mrb[0].mxu0
    %1523 = vdwg.mxu0
    %1524 = vmatprep.subr.mxu0 0.0
    %v1525 = vand.u32 %v1412, 4294901760
    %v1526 = vsub.f32 %v1412, %v1525
    %v1527 = vand.u32 %v1526, 4294901760
    %v1528 = vsub.f32 %v1526, %v1527
    %v1529 = vand.u32 %v1528, 4294901760
    %1530 = vmatpush1.msra.mxu0 %v1529
    %1531 = vmatprep.subr.mxu0 0.0
    %v1532 = vand.u32 %v1413, 4294901760
    %v1533 = vsub.f32 %v1413, %v1532
    %v1534 = vand.u32 %v1533, 4294901760
    %v1535 = vsub.f32 %v1533, %v1534
    %v1536 = vand.u32 %v1535, 4294901760
    %1537 = vmatpush1.msra.mxu0 %v1536
    %1538 = vmatprep.subr.mxu0 0.0
    %v1539 = vand.u32 %v1414, 4294901760
    %v1540 = vsub.f32 %v1414, %v1539
    %v1541 = vand.u32 %v1540, 4294901760
    %v1542 = vsub.f32 %v1540, %v1541
    %v1543 = vand.u32 %v1542, 4294901760
    %1544 = vmatpush1.msra.mxu0 %v1543
    %1545 = vmatprep.subr.mxu0 0.0
    %v1546 = vand.u32 %v1415, 4294901760
    %v1547 = vsub.f32 %v1415, %v1546
    %v1548 = vand.u32 %v1547, 4294901760
    %v1549 = vsub.f32 %v1547, %v1548
    %v1550 = vand.u32 %v1549, 4294901760
    %1551 = vmatpush1.msra.mxu0 %v1550
    %1552 = vmatprep.subr.mxu0 0.0
    %v1553 = vand.u32 %v1416, 4294901760
    %v1554 = vsub.f32 %v1416, %v1553
    %v1555 = vand.u32 %v1554, 4294901760
    %v1556 = vsub.f32 %v1554, %v1555
    %v1557 = vand.u32 %v1556, 4294901760
    %1558 = vmatpush1.msra.mxu0 %v1557
    %1559 = vmatprep.subr.mxu0 0.0
    %v1560 = vand.u32 %v1417, 4294901760
    %v1561 = vsub.f32 %v1417, %v1560
    %v1562 = vand.u32 %v1561, 4294901760
    %v1563 = vsub.f32 %v1561, %v1562
    %v1564 = vand.u32 %v1563, 4294901760
    %1565 = vmatpush1.msra.mxu0 %v1564
    %1566 = vmatprep.subr.mxu0 0.0
    %v1567 = vand.u32 %v1418, 4294901760
    %v1568 = vsub.f32 %v1418, %v1567
    %v1569 = vand.u32 %v1568, 4294901760
    %v1570 = vsub.f32 %v1568, %v1569
    %v1571 = vand.u32 %v1570, 4294901760
    %1572 = vmatpush1.msra.mxu0 %v1571
    %1573 = vmatprep.subr.mxu0 0.0
    %v1574 = vand.u32 %v1419, 4294901760
    %v1575 = vsub.f32 %v1419, %v1574
    %v1576 = vand.u32 %v1575, 4294901760
    %v1577 = vsub.f32 %v1575, %v1576
    %v1578 = vand.u32 %v1577, 4294901760
    %1579 = vmatpush1.msra.mxu0 %v1578
    %1580 = vmatprep.subr.mxu0 0.0
    %v1581 = vand.u32 %v1420, 4294901760
    %v1582 = vsub.f32 %v1420, %v1581
    %v1583 = vand.u32 %v1582, 4294901760
    %v1584 = vsub.f32 %v1582, %v1583
    %v1585 = vand.u32 %v1584, 4294901760
    %1586 = vmatpush1.msra.mxu0 %v1585
    %1587 = vmatprep.subr.mxu0 0.0
    %v1588 = vand.u32 %v1421, 4294901760
    %v1589 = vsub.f32 %v1421, %v1588
    %v1590 = vand.u32 %v1589, 4294901760
    %v1591 = vsub.f32 %v1589, %v1590
    %v1592 = vand.u32 %v1591, 4294901760
    %1593 = vmatpush1.msra.mxu0 %v1592
    %1594 = vmatprep.subr.mxu0 0.0
    %v1595 = vand.u32 %v1422, 4294901760
    %v1596 = vsub.f32 %v1422, %v1595
    %v1597 = vand.u32 %v1596, 4294901760
    %v1598 = vsub.f32 %v1596, %v1597
    %v1599 = vand.u32 %v1598, 4294901760
    %1600 = vmatpush1.msra.mxu0 %v1599
    %1601 = vmatprep.subr.mxu0 0.0
    %v1602 = vand.u32 %v1423, 4294901760
    %v1603 = vsub.f32 %v1423, %v1602
    %v1604 = vand.u32 %v1603, 4294901760
    %v1605 = vsub.f32 %v1603, %v1604
    %v1606 = vand.u32 %v1605, 4294901760
    %1607 = vmatpush1.msra.mxu0 %v1606
    %1608 = vmatprep.subr.mxu0 0.0
    %v1609 = vand.u32 %v1424, 4294901760
    %v1610 = vsub.f32 %v1424, %v1609
    %v1611 = vand.u32 %v1610, 4294901760
    %v1612 = vsub.f32 %v1610, %v1611
    %v1613 = vand.u32 %v1612, 4294901760
    %1614 = vmatpush1.msra.mxu0 %v1613
    %1615 = vmatprep.subr.mxu0 0.0
    %v1616 = vand.u32 %v1425, 4294901760
    %v1617 = vsub.f32 %v1425, %v1616
    %v1618 = vand.u32 %v1617, 4294901760
    %v1619 = vsub.f32 %v1617, %v1618
    %v1620 = vand.u32 %v1619, 4294901760
    %1621 = vmatpush1.msra.mxu0 %v1620
    %1622 = vmatprep.subr.mxu0 0.0
    %v1623 = vand.u32 %v1426, 4294901760
    %v1624 = vsub.f32 %v1426, %v1623
    %v1625 = vand.u32 %v1624, 4294901760
    %v1626 = vsub.f32 %v1624, %v1625
    %v1627 = vand.u32 %v1626, 4294901760
    %1628 = vmatpush1.msra.mxu0 %v1627
    %1629 = vmatprep.subr.mxu0 0.0
    %v1630 = vand.u32 %v1427, 4294901760
    %v1631 = vsub.f32 %v1427, %v1630
    %v1632 = vand.u32 %v1631, 4294901760
    %v1633 = vsub.f32 %v1631, %v1632
    %v1634 = vand.u32 %v1633, 4294901760
    %1635 = vmatpush1.msra.mxu0 %v1634
    %1636 = vmatprep.subr.mxu0 0.0
    %1637 = vmatpush1.msra.mxu0 0.0
    %1638 = vmatprep.subr.mxu0 0.0
    %1639 = vmatpush1.msra.mxu0 0.0
    %1640 = vmatprep.subr.mxu0 0.0
    %1641 = vmatpush1.msra.mxu0 0.0
    %1642 = vmatprep.subr.mxu0 0.0
    %1643 = vmatpush1.msra.mxu0 0.0
    %1644 = vmatprep.subr.mxu0 0.0
    %1645 = vmatpush1.msra.mxu0 0.0
    %1646 = vmatprep.subr.mxu0 0.0
    %1647 = vmatpush1.msra.mxu0 0.0
    %1648 = vmatprep.subr.mxu0 0.0
    %1649 = vmatpush1.msra.mxu0 0.0
    %1650 = vmatprep.subr.mxu0 0.0
    %1651 = vmatpush1.msra.mxu0 0.0
    %1652 = vmatprep.subr.mxu0 0.0
    %1653 = vmatpush1.msra.mxu0 0.0
    %1654 = vmatprep.subr.mxu0 0.0
    %1655 = vmatpush1.msra.mxu0 0.0
    %1656 = vmatprep.subr.mxu0 0.0
    %1657 = vmatpush1.msra.mxu0 0.0
    %1658 = vmatprep.subr.mxu0 0.0
    %1659 = vmatpush1.msra.mxu0 0.0
    %1660 = vmatprep.subr.mxu0 0.0
    %1661 = vmatpush1.msra.mxu0 0.0
    %1662 = vmatprep.subr.mxu0 0.0
    %1663 = vmatpush1.msra.mxu0 0.0
    %1664 = vmatprep.subr.mxu0 0.0
    %1665 = vmatpush1.msra.mxu0 0.0
    %1666 = vmatprep.subr.mxu0 0.0
    %1667 = vmatpush1.msra.mxu0 0.0
    %1668 = vmatprep.mubr.f32.mxu0 0.0
    %v1669 = vand.u32 %v1411, 4294901760
    %1670 = vmatmul.mubr.f32.gmra.mrb[0].mxu0 %v1669
    %v1671 = vpop.f32.mrb[0].mxu0
    %v1672 = vadd.f32 %v1521, %v1671
    %v1673 = vpop.f32.mrb[0].mxu0
    %1674 = vdwg.mxu0
    %1675 = vmatprep.subr.mxu0 0.0
    %v1676 = vand.u32 %v1412, 4294901760
    %v1677 = vsub.f32 %v1412, %v1676
    %1678 = vmatpush1.msra.mxu0 %v1677
    %1679 = vmatprep.subr.mxu0 0.0
    %v1680 = vand.u32 %v1413, 4294901760
    %v1681 = vsub.f32 %v1413, %v1680
    %1682 = vmatpush1.msra.mxu0 %v1681
    %1683 = vmatprep.subr.mxu0 0.0
    %v1684 = vand.u32 %v1414, 4294901760
    %v1685 = vsub.f32 %v1414, %v1684
    %1686 = vmatpush1.msra.mxu0 %v1685
    %1687 = vmatprep.subr.mxu0 0.0
    %v1688 = vand.u32 %v1415, 4294901760
    %v1689 = vsub.f32 %v1415, %v1688
    %1690 = vmatpush1.msra.mxu0 %v1689
    %1691 = vmatprep.subr.mxu0 0.0
    %v1692 = vand.u32 %v1416, 4294901760
    %v1693 = vsub.f32 %v1416, %v1692
    %1694 = vmatpush1.msra.mxu0 %v1693
    %1695 = vmatprep.subr.mxu0 0.0
    %v1696 = vand.u32 %v1417, 4294901760
    %v1697 = vsub.f32 %v1417, %v1696
    %1698 = vmatpush1.msra.mxu0 %v1697
    %1699 = vmatprep.subr.mxu0 0.0
    %v1700 = vand.u32 %v1418, 4294901760
    %v1701 = vsub.f32 %v1418, %v1700
    %1702 = vmatpush1.msra.mxu0 %v1701
    %1703 = vmatprep.subr.mxu0 0.0
    %v1704 = vand.u32 %v1419, 4294901760
    %v1705 = vsub.f32 %v1419, %v1704
    %1706 = vmatpush1.msra.mxu0 %v1705
    %1707 = vmatprep.subr.mxu0 0.0
    %v1708 = vand.u32 %v1420, 4294901760
    %v1709 = vsub.f32 %v1420, %v1708
    %1710 = vmatpush1.msra.mxu0 %v1709
    %1711 = vmatprep.subr.mxu0 0.0
    %v1712 = vand.u32 %v1421, 4294901760
    %v1713 = vsub.f32 %v1421, %v1712
    %1714 = vmatpush1.msra.mxu0 %v1713
    %1715 = vmatprep.subr.mxu0 0.0
    %v1716 = vand.u32 %v1422, 4294901760
    %v1717 = vsub.f32 %v1422, %v1716
    %1718 = vmatpush1.msra.mxu0 %v1717
    %1719 = vmatprep.subr.mxu0 0.0
    %v1720 = vand.u32 %v1423, 4294901760
    %v1721 = vsub.f32 %v1423, %v1720
    %1722 = vmatpush1.msra.mxu0 %v1721
    %1723 = vmatprep.subr.mxu0 0.0
    %v1724 = vand.u32 %v1424, 4294901760
    %v1725 = vsub.f32 %v1424, %v1724
    %1726 = vmatpush1.msra.mxu0 %v1725
    %1727 = vmatprep.subr.mxu0 0.0
    %v1728 = vand.u32 %v1425, 4294901760
    %v1729 = vsub.f32 %v1425, %v1728
    %1730 = vmatpush1.msra.mxu0 %v1729
    %1731 = vmatprep.subr.mxu0 0.0
    %v1732 = vand.u32 %v1426, 4294901760
    %v1733 = vsub.f32 %v1426, %v1732
    %1734 = vmatpush1.msra.mxu0 %v1733
    %1735 = vmatprep.subr.mxu0 0.0
    %v1736 = vand.u32 %v1427, 4294901760
    %v1737 = vsub.f32 %v1427, %v1736
    %1738 = vmatpush1.msra.mxu0 %v1737
    %1739 = vmatprep.subr.mxu0 0.0
    %1740 = vmatpush1.msra.mxu0 0.0
    %1741 = vmatprep.subr.mxu0 0.0
    %1742 = vmatpush1.msra.mxu0 0.0
    %1743 = vmatprep.subr.mxu0 0.0
    %1744 = vmatpush1.msra.mxu0 0.0
    %1745 = vmatprep.subr.mxu0 0.0
    %1746 = vmatpush1.msra.mxu0 0.0
    %1747 = vmatprep.subr.mxu0 0.0
    %1748 = vmatpush1.msra.mxu0 0.0
    %1749 = vmatprep.subr.mxu0 0.0
    %1750 = vmatpush1.msra.mxu0 0.0
    %1751 = vmatprep.subr.mxu0 0.0
    %1752 = vmatpush1.msra.mxu0 0.0
    %1753 = vmatprep.subr.mxu0 0.0
    %1754 = vmatpush1.msra.mxu0 0.0
    %1755 = vmatprep.subr.mxu0 0.0
    %1756 = vmatpush1.msra.mxu0 0.0
    %1757 = vmatprep.subr.mxu0 0.0
    %1758 = vmatpush1.msra.mxu0 0.0
    %1759 = vmatprep.subr.mxu0 0.0
    %1760 = vmatpush1.msra.mxu0 0.0
    %1761 = vmatprep.subr.mxu0 0.0
    %1762 = vmatpush1.msra.mxu0 0.0
    %1763 = vmatprep.subr.mxu0 0.0
    %1764 = vmatpush1.msra.mxu0 0.0
    %1765 = vmatprep.subr.mxu0 0.0
    %1766 = vmatpush1.msra.mxu0 0.0
    %1767 = vmatprep.subr.mxu0 0.0
    %1768 = vmatpush1.msra.mxu0 0.0
    %1769 = vmatprep.subr.mxu0 0.0
    %1770 = vmatpush1.msra.mxu0 0.0
    %1771 = vmatprep.mubr.f32.mxu0 0.0
    %v1772 = vand.u32 %v1411, 4294901760
    %v1773 = vsub.f32 %v1411, %v1772
    %1774 = vmatmul.mubr.f32.gmra.mrb[0].mxu0 %v1773
    %v1775 = vpop.f32.mrb[0].mxu0
    %v1776 = vadd.f32 %v1672, %v1775
    %v1777 = vpop.f32.mrb[0].mxu0
    %1778 = vdwg.mxu0
    %1779 = vmatprep.subr.mxu0 0.0
    %v1780 = vand.u32 %v1412, 4294901760
    %1781 = vmatpush1.msra.mxu0 %v1780
    %1782 = vmatprep.subr.mxu0 0.0
    %v1783 = vand.u32 %v1413, 4294901760
    %1784 = vmatpush1.msra.mxu0 %v1783
    %1785 = vmatprep.subr.mxu0 0.0
    %v1786 = vand.u32 %v1414, 4294901760
    %1787 = vmatpush1.msra.mxu0 %v1786
    %1788 = vmatprep.subr.mxu0 0.0
    %v1789 = vand.u32 %v1415, 4294901760
    %1790 = vmatpush1.msra.mxu0 %v1789
    %1791 = vmatprep.subr.mxu0 0.0
    %v1792 = vand.u32 %v1416, 4294901760
    %1793 = vmatpush1.msra.mxu0 %v1792
    %1794 = vmatprep.subr.mxu0 0.0
    %v1795 = vand.u32 %v1417, 4294901760
    %1796 = vmatpush1.msra.mxu0 %v1795
    %1797 = vmatprep.subr.mxu0 0.0
    %v1798 = vand.u32 %v1418, 4294901760
    %1799 = vmatpush1.msra.mxu0 %v1798
    %1800 = vmatprep.subr.mxu0 0.0
    %v1801 = vand.u32 %v1419, 4294901760
    %1802 = vmatpush1.msra.mxu0 %v1801
    %1803 = vmatprep.subr.mxu0 0.0
    %v1804 = vand.u32 %v1420, 4294901760
    %1805 = vmatpush1.msra.mxu0 %v1804
    %1806 = vmatprep.subr.mxu0 0.0
    %v1807 = vand.u32 %v1421, 4294901760
    %1808 = vmatpush1.msra.mxu0 %v1807
    %1809 = vmatprep.subr.mxu0 0.0
    %v1810 = vand.u32 %v1422, 4294901760
    %1811 = vmatpush1.msra.mxu0 %v1810
    %1812 = vmatprep.subr.mxu0 0.0
    %v1813 = vand.u32 %v1423, 4294901760
    %1814 = vmatpush1.msra.mxu0 %v1813
    %1815 = vmatprep.subr.mxu0 0.0
    %v1816 = vand.u32 %v1424, 4294901760
    %1817 = vmatpush1.msra.mxu0 %v1816
    %1818 = vmatprep.subr.mxu0 0.0
    %v1819 = vand.u32 %v1425, 4294901760
    %1820 = vmatpush1.msra.mxu0 %v1819
    %1821 = vmatprep.subr.mxu0 0.0
    %v1822 = vand.u32 %v1426, 4294901760
    %1823 = vmatpush1.msra.mxu0 %v1822
    %1824 = vmatprep.subr.mxu0 0.0
    %v1825 = vand.u32 %v1427, 4294901760
    %1826 = vmatpush1.msra.mxu0 %v1825
    %1827 = vmatprep.subr.mxu0 0.0
    %1828 = vmatpush1.msra.mxu0 0.0
    %1829 = vmatprep.subr.mxu0 0.0
    %1830 = vmatpush1.msra.mxu0 0.0
    %1831 = vmatprep.subr.mxu0 0.0
    %1832 = vmatpush1.msra.mxu0 0.0
    %1833 = vmatprep.subr.mxu0 0.0
    %1834 = vmatpush1.msra.mxu0 0.0
    %1835 = vmatprep.subr.mxu0 0.0
    %1836 = vmatpush1.msra.mxu0 0.0
    %1837 = vmatprep.subr.mxu0 0.0
    %1838 = vmatpush1.msra.mxu0 0.0
    %1839 = vmatprep.subr.mxu0 0.0
    %1840 = vmatpush1.msra.mxu0 0.0
    %1841 = vmatprep.subr.mxu0 0.0
    %1842 = vmatpush1.msra.mxu0 0.0
    %1843 = vmatprep.subr.mxu0 0.0
    %1844 = vmatpush1.msra.mxu0 0.0
    %1845 = vmatprep.subr.mxu0 0.0
    %1846 = vmatpush1.msra.mxu0 0.0
    %1847 = vmatprep.subr.mxu0 0.0
    %1848 = vmatpush1.msra.mxu0 0.0
    %1849 = vmatprep.subr.mxu0 0.0
    %1850 = vmatpush1.msra.mxu0 0.0
    %1851 = vmatprep.subr.mxu0 0.0
    %1852 = vmatpush1.msra.mxu0 0.0
    %1853 = vmatprep.subr.mxu0 0.0
    %1854 = vmatpush1.msra.mxu0 0.0
    %1855 = vmatprep.subr.mxu0 0.0
    %1856 = vmatpush1.msra.mxu0 0.0
    %1857 = vmatprep.subr.mxu0 0.0
    %1858 = vmatpush1.msra.mxu0 0.0
    %1859 = vmatprep.mubr.f32.mxu0 0.0
    %v1860 = vand.u32 %v1411, 4294901760
    %v1861 = vsub.f32 %v1411, %v1860
    %v1862 = vand.u32 %v1861, 4294901760
    %1863 = vmatmul.mubr.f32.gmra.mrb[0].mxu0 %v1862
    %v1864 = vpop.f32.mrb[0].mxu0
    %v1865 = vadd.f32 %v1776, %v1864
    %v1866 = vpop.f32.mrb[0].mxu0
    %1867 = vdwg.mxu0
    %1868 = vmatprep.subr.mxu0 0.0
    %v1869 = vand.u32 %v1412, 4294901760
    %v1870 = vsub.f32 %v1412, %v1869
    %v1871 = vand.u32 %v1870, 4294901760
    %1872 = vmatpush1.msra.mxu0 %v1871
    %1873 = vmatprep.subr.mxu0 0.0
    %v1874 = vand.u32 %v1413, 4294901760
    %v1875 = vsub.f32 %v1413, %v1874
    %v1876 = vand.u32 %v1875, 4294901760
    %1877 = vmatpush1.msra.mxu0 %v1876
    %1878 = vmatprep.subr.mxu0 0.0
    %v1879 = vand.u32 %v1414, 4294901760
    %v1880 = vsub.f32 %v1414, %v1879
    %v1881 = vand.u32 %v1880, 4294901760
    %1882 = vmatpush1.msra.mxu0 %v1881
    %1883 = vmatprep.subr.mxu0 0.0
    %v1884 = vand.u32 %v1415, 4294901760
    %v1885 = vsub.f32 %v1415, %v1884
    %v1886 = vand.u32 %v1885, 4294901760
    %1887 = vmatpush1.msra.mxu0 %v1886
    %1888 = vmatprep.subr.mxu0 0.0
    %v1889 = vand.u32 %v1416, 4294901760
    %v1890 = vsub.f32 %v1416, %v1889
    %v1891 = vand.u32 %v1890, 4294901760
    %1892 = vmatpush1.msra.mxu0 %v1891
    %1893 = vmatprep.subr.mxu0 0.0
    %v1894 = vand.u32 %v1417, 4294901760
    %v1895 = vsub.f32 %v1417, %v1894
    %v1896 = vand.u32 %v1895, 4294901760
    %1897 = vmatpush1.msra.mxu0 %v1896
    %1898 = vmatprep.subr.mxu0 0.0
    %v1899 = vand.u32 %v1418, 4294901760
    %v1900 = vsub.f32 %v1418, %v1899
    %v1901 = vand.u32 %v1900, 4294901760
    %1902 = vmatpush1.msra.mxu0 %v1901
    %1903 = vmatprep.subr.mxu0 0.0
    %v1904 = vand.u32 %v1419, 4294901760
    %v1905 = vsub.f32 %v1419, %v1904
    %v1906 = vand.u32 %v1905, 4294901760
    %1907 = vmatpush1.msra.mxu0 %v1906
    %1908 = vmatprep.subr.mxu0 0.0
    %v1909 = vand.u32 %v1420, 4294901760
    %v1910 = vsub.f32 %v1420, %v1909
    %v1911 = vand.u32 %v1910, 4294901760
    %1912 = vmatpush1.msra.mxu0 %v1911
    %1913 = vmatprep.subr.mxu0 0.0
    %v1914 = vand.u32 %v1421, 4294901760
    %v1915 = vsub.f32 %v1421, %v1914
    %v1916 = vand.u32 %v1915, 4294901760
    %1917 = vmatpush1.msra.mxu0 %v1916
    %1918 = vmatprep.subr.mxu0 0.0
    %v1919 = vand.u32 %v1422, 4294901760
    %v1920 = vsub.f32 %v1422, %v1919
    %v1921 = vand.u32 %v1920, 4294901760
    %1922 = vmatpush1.msra.mxu0 %v1921
    %1923 = vmatprep.subr.mxu0 0.0
    %v1924 = vand.u32 %v1423, 4294901760
    %v1925 = vsub.f32 %v1423, %v1924
    %v1926 = vand.u32 %v1925, 4294901760
    %1927 = vmatpush1.msra.mxu0 %v1926
    %1928 = vmatprep.subr.mxu0 0.0
    %v1929 = vand.u32 %v1424, 4294901760
    %v1930 = vsub.f32 %v1424, %v1929
    %v1931 = vand.u32 %v1930, 4294901760
    %1932 = vmatpush1.msra.mxu0 %v1931
    %1933 = vmatprep.subr.mxu0 0.0
    %v1934 = vand.u32 %v1425, 4294901760
    %v1935 = vsub.f32 %v1425, %v1934
    %v1936 = vand.u32 %v1935, 4294901760
    %1937 = vmatpush1.msra.mxu0 %v1936
    %1938 = vmatprep.subr.mxu0 0.0
    %v1939 = vand.u32 %v1426, 4294901760
    %v1940 = vsub.f32 %v1426, %v1939
    %v1941 = vand.u32 %v1940, 4294901760
    %1942 = vmatpush1.msra.mxu0 %v1941
    %1943 = vmatprep.subr.mxu0 0.0
    %v1944 = vand.u32 %v1427, 4294901760
    %v1945 = vsub.f32 %v1427, %v1944
    %v1946 = vand.u32 %v1945, 4294901760
    %1947 = vmatpush1.msra.mxu0 %v1946
    %1948 = vmatprep.subr.mxu0 0.0
    %1949 = vmatpush1.msra.mxu0 0.0
    %1950 = vmatprep.subr.mxu0 0.0
    %1951 = vmatpush1.msra.mxu0 0.0
    %1952 = vmatprep.subr.mxu0 0.0
    %1953 = vmatpush1.msra.mxu0 0.0
    %1954 = vmatprep.subr.mxu0 0.0
    %1955 = vmatpush1.msra.mxu0 0.0
    %1956 = vmatprep.subr.mxu0 0.0
    %1957 = vmatpush1.msra.mxu0 0.0
    %1958 = vmatprep.subr.mxu0 0.0
    %1959 = vmatpush1.msra.mxu0 0.0
    %1960 = vmatprep.subr.mxu0 0.0
    %1961 = vmatpush1.msra.mxu0 0.0
    %1962 = vmatprep.subr.mxu0 0.0
    %1963 = vmatpush1.msra.mxu0 0.0
    %1964 = vmatprep.subr.mxu0 0.0
    %1965 = vmatpush1.msra.mxu0 0.0
    %1966 = vmatprep.subr.mxu0 0.0
    %1967 = vmatpush1.msra.mxu0 0.0
    %1968 = vmatprep.subr.mxu0 0.0
    %1969 = vmatpush1.msra.mxu0 0.0
    %1970 = vmatprep.subr.mxu0 0.0
    %1971 = vmatpush1.msra.mxu0 0.0
    %1972 = vmatprep.subr.mxu0 0.0
    %1973 = vmatpush1.msra.mxu0 0.0
    %1974 = vmatprep.subr.mxu0 0.0
    %1975 = vmatpush1.msra.mxu0 0.0
    %1976 = vmatprep.subr.mxu0 0.0
    %1977 = vmatpush1.msra.mxu0 0.0
    %1978 = vmatprep.subr.mxu0 0.0
    %1979 = vmatpush1.msra.mxu0 0.0
    %1980 = vmatprep.mubr.f32.mxu0 0.0
    %v1981 = vand.u32 %v1411, 4294901760
    %1982 = vmatmul.mubr.f32.gmra.mrb[0].mxu0 %v1981
    %v1983 = vpop.f32.mrb[0].mxu0
    %v1984 = vadd.f32 %v1865, %v1983
    %v1985 = vpop.f32.mrb[0].mxu0
    %1986 = vdwg.mxu0
    %1987 = vmatprep.subr.mxu0 0.0
    %v1988 = vand.u32 %v1412, 4294901760
    %1989 = vmatpush1.msra.mxu0 %v1988
    %1990 = vmatprep.subr.mxu0 0.0
    %v1991 = vand.u32 %v1413, 4294901760
    %1992 = vmatpush1.msra.mxu0 %v1991
    %1993 = vmatprep.subr.mxu0 0.0
    %v1994 = vand.u32 %v1414, 4294901760
    %1995 = vmatpush1.msra.mxu0 %v1994
    %1996 = vmatprep.subr.mxu0 0.0
    %v1997 = vand.u32 %v1415, 4294901760
    %1998 = vmatpush1.msra.mxu0 %v1997
    %1999 = vmatprep.subr.mxu0 0.0
    %v2000 = vand.u32 %v1416, 4294901760
    %2001 = vmatpush1.msra.mxu0 %v2000
    %2002 = vmatprep.subr.mxu0 0.0
    %v2003 = vand.u32 %v1417, 4294901760
    %2004 = vmatpush1.msra.mxu0 %v2003
    %2005 = vmatprep.subr.mxu0 0.0
    %v2006 = vand.u32 %v1418, 4294901760
    %2007 = vmatpush1.msra.mxu0 %v2006
    %2008 = vmatprep.subr.mxu0 0.0
    %v2009 = vand.u32 %v1419, 4294901760
    %2010 = vmatpush1.msra.mxu0 %v2009
    %2011 = vmatprep.subr.mxu0 0.0
    %v2012 = vand.u32 %v1420, 4294901760
    %2013 = vmatpush1.msra.mxu0 %v2012
    %2014 = vmatprep.subr.mxu0 0.0
    %v2015 = vand.u32 %v1421, 4294901760
    %2016 = vmatpush1.msra.mxu0 %v2015
    %2017 = vmatprep.subr.mxu0 0.0
    %v2018 = vand.u32 %v1422, 4294901760
    %2019 = vmatpush1.msra.mxu0 %v2018
    %2020 = vmatprep.subr.mxu0 0.0
    %v2021 = vand.u32 %v1423, 4294901760
    %2022 = vmatpush1.msra.mxu0 %v2021
    %2023 = vmatprep.subr.mxu0 0.0
    %v2024 = vand.u32 %v1424, 4294901760
    %2025 = vmatpush1.msra.mxu0 %v2024
    %2026 = vmatprep.subr.mxu0 0.0
    %v2027 = vand.u32 %v1425, 4294901760
    %2028 = vmatpush1.msra.mxu0 %v2027
    %2029 = vmatprep.subr.mxu0 0.0
    %v2030 = vand.u32 %v1426, 4294901760
    %2031 = vmatpush1.msra.mxu0 %v2030
    %2032 = vmatprep.subr.mxu0 0.0
    %v2033 = vand.u32 %v1427, 4294901760
    %2034 = vmatpush1.msra.mxu0 %v2033
    %2035 = vmatprep.subr.mxu0 0.0
    %2036 = vmatpush1.msra.mxu0 0.0
    %2037 = vmatprep.subr.mxu0 0.0
    %2038 = vmatpush1.msra.mxu0 0.0
    %2039 = vmatprep.subr.mxu0 0.0
    %2040 = vmatpush1.msra.mxu0 0.0
    %2041 = vmatprep.subr.mxu0 0.0
    %2042 = vmatpush1.msra.mxu0 0.0
    %2043 = vmatprep.subr.mxu0 0.0
    %2044 = vmatpush1.msra.mxu0 0.0
    %2045 = vmatprep.subr.mxu0 0.0
    %2046 = vmatpush1.msra.mxu0 0.0
    %2047 = vmatprep.subr.mxu0 0.0
    %2048 = vmatpush1.msra.mxu0 0.0
    %2049 = vmatprep.subr.mxu0 0.0
    %2050 = vmatpush1.msra.mxu0 0.0
    %2051 = vmatprep.subr.mxu0 0.0
    %2052 = vmatpush1.msra.mxu0 0.0
    %2053 = vmatprep.subr.mxu0 0.0
    %2054 = vmatpush1.msra.mxu0 0.0
    %2055 = vmatprep.subr.mxu0 0.0
    %2056 = vmatpush1.msra.mxu0 0.0
    %2057 = vmatprep.subr.mxu0 0.0
    %2058 = vmatpush1.msra.mxu0 0.0
    %2059 = vmatprep.subr.mxu0 0.0
    %2060 = vmatpush1.msra.mxu0 0.0
    %2061 = vmatprep.subr.mxu0 0.0
    %2062 = vmatpush1.msra.mxu0 0.0
    %2063 = vmatprep.subr.mxu0 0.0
    %2064 = vmatpush1.msra.mxu0 0.0
    %2065 = vmatprep.subr.mxu0 0.0
    %2066 = vmatpush1.msra.mxu0 0.0
    %2067 = vmatprep.mubr.f32.mxu0 0.0
    %v2068 = vand.u32 %v1411, 4294901760
    %2069 = vmatmul.mubr.f32.gmra.mrb[0].mxu0 %v2068
    %v2070 = vpop.f32.mrb[0].mxu0
    %v2071 = vadd.f32 %v1984, %v2070
    %v2072 = vpop.f32.mrb[0].mxu0
    %2073 = vdwg.mxu0
    %2074 = vst [vmem:[#allocation11] sm:$0xff] %v2071
    // Predicated region
    $region42: #{tpu_custom_call.1} parent=1 // pred_check
      _
    $region43: #{tpu_custom_call.1} parent=1 // pred_check_branch
      %2076 = sbr.rel (0) target = $region45
    $region44: #{tpu_custom_call.1} parent=1 // pred_region
      %s2078 = ssub.s32 128, 128
      %2079 = vsyncadd [#allocation4], %s2078
      %s2081 = sshll.u32 [#allocation11], 4
      %s2082 = int_to_ptr.vmem [resolvable:$true] %s2081
      %2084 = dma.vmem_to_hbm [thread:$0]  %s2082, 128, %s5, [#allocation4]
    $region45: #{tpu_custom_call.1} parent=1 // pred_fallthru
      _
    // Predicated region
    $region46: #{tpu_custom_call.1} parent=1 // pred_check
      _
    $region47: #{tpu_custom_call.1} parent=1 // pred_check_branch
      %2086 = sbr.rel (0) target = $region49
    $region48: #{tpu_custom_call.1} parent=1 // pred_region
      %2087 = dma.done [#allocation4], 128
    $region49: #{tpu_custom_call.1} parent=1 // pred_fallthru
      _
    %2088 = vsyncpa [#allocation3], 1
    %2089 = vsyncpa [#allocation6], 1
    %2090 = vsyncpa [#allocation9], 1
    %2091 = vsyncpa [#allocation4], 1

</llo_original>
